<compile_context>
chip_gen: v5e
topology: v5e:2x2
jax: 0.10.0
libtpu: 0.0.40
codegen_flags: <defaults>
</compile_context>

<pallas_src>
import functools
import math

import jax
import jax.numpy as jnp
import numpy as np
from jax.experimental import pallas as pl
from jax.experimental.pallas import tpu as pltpu

NEG = -1e30  # log(0) stand-in for padded (not-yet-existing) run-length hypotheses


def _hazard_logs(hazard: float):
    # mirror PyTorch: hazard_logit -> sigmoid -> log / log(1 - .)
    hl = math.log(hazard / (1.0 - hazard))
    sig = 1.0 / (1.0 + math.exp(-hl))
    return math.log(sig), math.log(1.0 - sig)


def _variance_schedules(T, Dy, sigma2_0, sigma2_n):
    """Trace-time tables for the data-independent conjugate-Gaussian variance recursion.

    s[n] = posterior variance after n updates:  s[0] = sigma2_0,
    s[n+1] = 1 / (1/s[n] + 1/sigma2_n).
    At step i, run-length slot r has n = i - r updates (r <= i); slots r > i are padded
    (masked downstream by log_prgx ~ NEG), slot r = i+1 is freshly created <- prior.
    """
    R = T + 1
    s = np.empty(T + 1, np.float64)
    s[0] = sigma2_0
    for n in range(T):
        s[n + 1] = 1.0 / (1.0 / s[n] + 1.0 / sigma2_n)

    c_tab = np.zeros((T, R), np.float32)     # -0.5 * Dy * log(2*pi*var)
    hiv_tab = np.zeros((T, R), np.float32)   # 0.5 / var
    a_tab = np.zeros((T, R), np.float32)     # sig_new / sig       (0 at the created slot)
    b_tab = np.zeros((T, R), np.float32)     # sig_new / sigma2_n  (0 at the created slot)
    for i in range(T):
        for r in range(R):
            n = i - r if r <= i else 0       # padded slots: any finite value (masked)
            var = s[n] + sigma2_n
            c_tab[i, r] = -0.5 * Dy * math.log(2.0 * math.pi * var)
            hiv_tab[i, r] = 0.5 / var
            if r == i + 1:                   # slot created at this step <- prior (mu = 0)
                a_tab[i, r] = 0.0
                b_tab[i, r] = 0.0
            else:
                a_tab[i, r] = s[n + 1] / s[n]
                b_tab[i, r] = s[n + 1] / sigma2_n

    sig_final = np.array([s[T - r] for r in range(R)], np.float32)   # final variances
    return c_tab, hiv_tab, a_tab, b_tab, sig_final


def moca_kernel(x_ref, y_ref, w_ref, c_ref, hiv_ref, a_ref, b_ref, sigf_ref,
                nll_ref, lph_ref, mu_ref, sig_ref,
                resid_scr, *, log_hazard, log_1m_hazard):
    """Full MOCA recursion for one batch tile; batch is the lane (last) axis everywhere.

    x_ref:     (Dx, T, B)   inputs
    y_ref:     (Dy, T, B)   targets
    w_ref:     (Dy, Dx)     fixed feature weights (SMEM scalars)
    c_ref:     (R, T)       -0.5*Dy*log(2*pi*var) schedule, column i = step i
    hiv_ref:   (R, T)       0.5/var schedule
    a_ref:     (R, T)       mean-update gain on old mean (0 at freshly created slot)
    b_ref:     (R, T)       mean-update gain on residual (0 at freshly created slot)
    sigf_ref:  (R, 1)       final posterior variances (data independent)
    nll_ref:   (T, B)       per-step NLL (output)
    lph_ref:   (T, R, B)    log p(r | x_{<t}) entering each step, padded slots ~ NEG (output)
    mu_ref:    (Dy, R, B)   final posterior means (output)
    sig_ref:   (Dy, R, B)   final posterior variances (output)
    resid_scr: (Dy, T, B)   residuals y - W x for the whole horizon (scratch)
    """
    Dx, T, B = x_ref.shape
    Dy = y_ref.shape[0]
    R = T + 1

    # ---- hoisted feature map: resid = y - W x for every step at once (VPU only) ----
    xs = [x_ref[dx] for dx in range(Dx)]                   # Dx contiguous (T, B) loads
    for dy in range(Dy):
        acc = y_ref[dy]                                    # (T, B)
        for dx in range(Dx):
            acc = acc - w_ref[dy, dx] * xs[dx]
        resid_scr[dy] = acc                                # full-slab store

    # ---- init: prior mean everywhere, run-length posterior = delta at r = 0 ----
    row_ids = jax.lax.broadcasted_iota(jnp.int32, (R, B), 0)
    lp = jnp.where(row_ids == 0, jnp.float32(0.0), jnp.float32(NEG))   # (R, B) register
    mu = [jnp.zeros((R, B), jnp.float32) for _ in range(Dy)]           # registers
    nll_rows = []

    # T is small here: unroll statically so all table slices are static.
    # TODO(synk): convert to lax.fori_loop + pl.ds table indexing for large T.
    for i in range(T):
        lph_ref[i] = lp                                    # log_prgx_list.append(...)

        c_i = c_ref[:, i:i + 1]                            # (R, 1)
        hiv_i = hiv_ref[:, i:i + 1]                        # (R, 1)
        a_i = a_ref[:, i:i + 1]                            # (R, 1)
        b_i = b_ref[:, i:i + 1]                            # (R, 1)

        # log predictive prob per run-length hypothesis + posterior-mean update (per y-dim)
        sq = jnp.zeros((R, B), jnp.float32)
        mu_new = []
        for dy in range(Dy):
            rd = resid_scr[dy, i:i + 1, :]                 # (1, B)
            md = mu[dy]                                    # (R, B)
            d = rd - md
            sq = sq + d * d
            # conjugate-Gaussian mean update; cat(prior) folded in (a = b = 0 at slot i+1)
            mu_new.append(a_i * md + b_i * rd)
        mu = mu_new
        log_pi = c_i - hiv_i * sq                          # (R, B)

        # NLL: -logsumexp over run-length hypotheses (the only logsumexp left)
        s = log_pi + lp
        m = jnp.max(s, axis=0, keepdims=True)              # (1, B)
        lse = m + jnp.log(jnp.sum(jnp.exp(s - m), axis=0, keepdims=True))
        nll_rows.append(-lse)

        # changepoint recursion: grow each hypothesis, place the new r = i+1 hypothesis.
        # The log_softmax normalizer equals lse analytically (h + (1-h) = 1), so the
        # second logsumexp of the reference is dropped.
        lp = jnp.where(row_ids == (i + 1),
                       jnp.float32(log_hazard),
                       jnp.float32(log_1m_hazard) + s - lse)

    # single full-tile NLL store after the loop (no per-step masked row stores)
    nll_ref[...] = jnp.concatenate(nll_rows, axis=0)       # (T, B)

    # final posterior means / data-independent variance schedule, leading-axis slab stores
    for dy in range(Dy):
        mu_ref[dy] = mu[dy]
    sig_col = jnp.broadcast_to(sigf_ref[...], (R, B))      # lane broadcast of (R,1)
    for dy in range(Dy):
        sig_ref[dy] = sig_col


def _pick_b_tile(b_pad):
    # lane-dense tiles (multiples of 128); prefer >= 2 grid tiles for megacore / v7x 2 TCs
    for cand in (512, 384, 256, 128):
        if b_pad % cand == 0 and b_pad // cand >= 2:
            return cand
    for cand in (512, 384, 256, 128):
        if b_pad % cand == 0:
            return cand
    return b_pad


def moca_forward(x_mat, y_mat, W, *, hazard=0.05, sigma2_0=1.0, sigma2_n=0.25):
    B, T, Dx = x_mat.shape
    Dy = y_mat.shape[-1]
    R = T + 1

    # pad batch (the lane axis) to a multiple of 128 so every store is lane-dense
    b_pad = max(128, pl.cdiv(B, 128) * 128)
    b_tile = _pick_b_tile(b_pad)
    grid_b = b_pad // b_tile
    if b_pad != B:
        x_mat = jnp.pad(x_mat, ((0, b_pad - B), (0, 0), (0, 0)))
        y_mat = jnp.pad(y_mat, ((0, b_pad - B), (0, 0), (0, 0)))

    log_h, log_1mh = _hazard_logs(hazard)
    c_tab, hiv_tab, a_tab, b_tab, sig_final = _variance_schedules(T, Dy, sigma2_0, sigma2_n)

    kernel = functools.partial(moca_kernel, log_hazard=log_h, log_1m_hazard=log_1mh)

    # leading per-step-sliced axes, lane-dense batch last
    x_t = jnp.transpose(x_mat, (2, 1, 0))   # (Dx, T, Bp)
    y_t = jnp.transpose(y_mat, (2, 1, 0))   # (Dy, T, Bp)

    out_shape = (
        jax.ShapeDtypeStruct((T, b_pad), jnp.float32),        # nlls            (time, batch)
        jax.ShapeDtypeStruct((T, R, b_pad), jnp.float32),     # log_prgx history (padded)
        jax.ShapeDtypeStruct((Dy, R, b_pad), jnp.float32),    # final posterior mean
        jax.ShapeDtypeStruct((Dy, R, b_pad), jnp.float32),    # final posterior variance
    )

    # rough per-tile VMEM footprint: double-buffered I/O blocks + residual scratch
    blk_bytes = 4 * b_tile * (Dx * T + Dy * T + T + T * R + 2 * Dy * R)
    need_bytes = 2 * blk_bytes + 4 * Dy * T * b_tile + (1 << 20)
    cp_kwargs = dict(dimension_semantics=("parallel",))
    if need_bytes > (32 << 20):
        cp_kwargs["vmem_limit_bytes"] = int(need_bytes * 1.25)

    nll_tb, lph_trb, mu_drb, sig_drb = pl.pallas_call(
        kernel,
        out_shape=out_shape,
        grid=(grid_b,),
        in_specs=[
            pl.BlockSpec((Dx, T, b_tile), lambda b: (0, 0, b)),
            pl.BlockSpec((Dy, T, b_tile), lambda b: (0, 0, b)),
            pl.BlockSpec(memory_space=pltpu.MemorySpace.SMEM),   # W scalars
            pl.BlockSpec((R, T), lambda b: (0, 0)),              # c table
            pl.BlockSpec((R, T), lambda b: (0, 0)),              # half-inverse-var table
            pl.BlockSpec((R, T), lambda b: (0, 0)),              # mean gain a
            pl.BlockSpec((R, T), lambda b: (0, 0)),              # mean gain b
            pl.BlockSpec((R, 1), lambda b: (0, 0)),              # final variances
        ],
        out_specs=(
            pl.BlockSpec((T, b_tile), lambda b: (0, b)),
            pl.BlockSpec((T, R, b_tile), lambda b: (0, 0, b)),
            pl.BlockSpec((Dy, R, b_tile), lambda b: (0, 0, b)),
            pl.BlockSpec((Dy, R, b_tile), lambda b: (0, 0, b)),
        ),
        scratch_shapes=[
            pltpu.VMEM((Dy, T, b_tile), jnp.float32),   # residuals for the whole horizon
        ],
        compiler_params=pltpu.CompilerParams(**cp_kwargs),
    )(x_t, y_t, jnp.asarray(W, jnp.float32),
      jnp.asarray(c_tab.T), jnp.asarray(hiv_tab.T),
      jnp.asarray(a_tab.T), jnp.asarray(b_tab.T),
      jnp.asarray(sig_final[:, None]))

    # back to the PyTorch-facing (B, ...) layout, dropping the padded batch lanes
    nlls = jnp.transpose(nll_tb[:, :B], (1, 0))           # (B, T)
    lph = jnp.transpose(lph_trb[:, :, :B], (2, 0, 1))     # (B, T, R)
    mu = jnp.transpose(mu_drb[:, :, :B], (2, 1, 0))       # (B, R, Dy)
    sig = jnp.transpose(sig_drb[:, :, :B], (2, 1, 0))     # (B, R, Dy)
    return nlls, lph, mu, sig


def moca_reference(x_mat, y_mat, W, *, hazard=0.05, sigma2_0=1.0, sigma2_n=0.25):
    """Pure-JAX mirror of the PyTorch MOCA loop (growing arrays, no padding)."""
    B, T, _ = x_mat.shape
    Dy = y_mat.shape[-1]
    log_h, log_1mh = _hazard_logs(hazard)

    mu = jnp.zeros((B, 1, Dy), jnp.float32)
    sig = jnp.full((B, 1, Dy), sigma2_0, jnp.float32)
    lp = jnp.zeros((B, 1), jnp.float32)  # init_log_prgx broadcast

    nlls, lp_list = [], []
    for i in range(T):
        x = x_mat[:, i, :]
        y = y_mat[:, i, :]
        resid = y - x @ W.T
        var = sig + sigma2_n
        log_pi = jnp.sum(
            -0.5 * jnp.log(2.0 * math.pi * var)
            - 0.5 * (resid[:, None, :] - mu) ** 2 / var,
            axis=-1,
        )
        lp_list.append(lp)
        s = log_pi + lp
        nlls.append(-jax.scipy.special.logsumexp(s, axis=1))

        sig_new = 1.0 / (1.0 / sig + 1.0 / sigma2_n)
        mu_new = sig_new * (mu / sig + resid[:, None, :] / sigma2_n)

        grow = log_1mh + s
        chpt = log_h + jax.scipy.special.logsumexp(s, axis=1)
        prx = jnp.concatenate([grow, chpt[:, None]], axis=1)
        lp = jax.nn.log_softmax(prx, axis=1)

        mu = jnp.concatenate([mu_new, jnp.zeros((B, 1, Dy), jnp.float32)], axis=1)
        sig = jnp.concatenate([sig_new, jnp.full((B, 1, Dy), sigma2_0, jnp.float32)], axis=1)

    return jnp.stack(nlls, axis=1), lp_list, mu, sig


if __name__ == "__main__":
    B, T, Dx, Dy = 2, 8, 4, 3

    key = jax.random.PRNGKey(0)
    kx, ky, kw = jax.random.split(key, 3)
    x_mat = jax.random.normal(kx, (B, T, Dx), jnp.float32)
    y_mat = jax.random.normal(ky, (B, T, Dy), jnp.float32)
    # deterministic "meta-learner backbone" weights (nn.Linear-style (y_dim, x_dim))
    W = 0.5 * jax.random.normal(kw, (Dy, Dx), jnp.float32)

    nlls, lp_hist, mu_f, sig_f = jax.block_until_ready(moca_forward(x_mat, y_mat, W))

    r_nlls, r_lp_list, r_mu, r_sig = moca_reference(x_mat, y_mat, W)

    assert np.allclose(np.asarray(nlls), np.asarray(r_nlls), rtol=1e-4, atol=1e-4)
    for i, r_lp in enumerate(r_lp_list):
        got = np.asarray(lp_hist[:, i, : i + 1])
        want = np.broadcast_to(np.asarray(r_lp), got.shape)
        assert np.allclose(got, want, rtol=1e-4, atol=1e-4)
    assert np.allclose(np.asarray(mu_f), np.asarray(r_mu), rtol=1e-4, atol=1e-4)
    assert np.allclose(np.asarray(sig_f), np.asarray(r_sig), rtol=1e-4, atol=1e-4)

    print("KERNEL_OK")
</pallas_src>

<mosaic_0001>
module attributes {stable_mosaic.version = 11 : i64} {
  func.func @moca_kernel(%arg0: i32, %arg1: memref<4x8x128xf32, #tpu.memory_space<vmem>>, %arg2: memref<3x8x128xf32, #tpu.memory_space<vmem>>, %arg3: memref<3x4xf32, #tpu.memory_space<smem>>, %arg4: memref<9x8xf32, #tpu.memory_space<vmem>>, %arg5: memref<9x8xf32, #tpu.memory_space<vmem>>, %arg6: memref<9x8xf32, #tpu.memory_space<vmem>>, %arg7: memref<9x8xf32, #tpu.memory_space<vmem>>, %arg8: memref<9x1xf32, #tpu.memory_space<vmem>>, %arg9: memref<8x128xf32, #tpu.memory_space<vmem>>, %arg10: memref<8x9x128xf32, #tpu.memory_space<vmem>>, %arg11: memref<3x9x128xf32, #tpu.memory_space<vmem>>, %arg12: memref<3x9x128xf32, #tpu.memory_space<vmem>>, %arg13: memref<3x8x128xf32, #tpu.memory_space<vmem>>) attributes {dimension_semantics = [#tpu.dimension_semantics<parallel>], iteration_bounds = array<i64: 1>, scalar_prefetch = 0 : i64, scratch_operands = 1 : i64, tpu.core_type = #tpu.core_type<tc>, window_params = [{transform_indices = @transform_0, window_bounds = array<i64: 4, 8, 128>}, {transform_indices = @transform_1, window_bounds = array<i64: 3, 8, 128>}, {transform_indices = @transform_2, window_bounds = array<i64: 3, 4>}, {pipeline_mode = #tpu.pipeline_mode<synchronous>, transform_indices = @transform_3, window_bounds = array<i64: 9, 8>}, {pipeline_mode = #tpu.pipeline_mode<synchronous>, transform_indices = @transform_4, window_bounds = array<i64: 9, 8>}, {pipeline_mode = #tpu.pipeline_mode<synchronous>, transform_indices = @transform_5, window_bounds = array<i64: 9, 8>}, {pipeline_mode = #tpu.pipeline_mode<synchronous>, transform_indices = @transform_6, window_bounds = array<i64: 9, 8>}, {pipeline_mode = #tpu.pipeline_mode<synchronous>, transform_indices = @transform_7, window_bounds = array<i64: 9, 1>}, {transform_indices = @transform_8, window_bounds = array<i64: 8, 128>}, {transform_indices = @transform_9, window_bounds = array<i64: 8, 9, 128>}, {transform_indices = @transform_10, window_bounds = array<i64: 3, 9, 128>}, {transform_indices = @transform_11, window_bounds = array<i64: 3, 9, 128>}]} {
    %c0 = arith.constant 0 : index
    %c0_0 = arith.constant 0 : index
    %c0_1 = arith.constant 0 : index
    %0 = vector.load %arg1[%c0, %c0_0, %c0_1] : memref<4x8x128xf32, #tpu.memory_space<vmem>>, vector<1x8x128xf32>
    %1 = vector.shape_cast %0 : vector<1x8x128xf32> to vector<8x128xf32>
    %c1 = arith.constant 1 : index
    %c0_2 = arith.constant 0 : index
    %c0_3 = arith.constant 0 : index
    %2 = vector.load %arg1[%c1, %c0_2, %c0_3] : memref<4x8x128xf32, #tpu.memory_space<vmem>>, vector<1x8x128xf32>
    %3 = vector.shape_cast %2 : vector<1x8x128xf32> to vector<8x128xf32>
    %c2 = arith.constant 2 : index
    %c0_4 = arith.constant 0 : index
    %c0_5 = arith.constant 0 : index
    %4 = vector.load %arg1[%c2, %c0_4, %c0_5] : memref<4x8x128xf32, #tpu.memory_space<vmem>>, vector<1x8x128xf32>
    %5 = vector.shape_cast %4 : vector<1x8x128xf32> to vector<8x128xf32>
    %c3 = arith.constant 3 : index
    %c0_6 = arith.constant 0 : index
    %c0_7 = arith.constant 0 : index
    %6 = vector.load %arg1[%c3, %c0_6, %c0_7] : memref<4x8x128xf32, #tpu.memory_space<vmem>>, vector<1x8x128xf32>
    %7 = vector.shape_cast %6 : vector<1x8x128xf32> to vector<8x128xf32>
    %c0_8 = arith.constant 0 : index
    %c0_9 = arith.constant 0 : index
    %c0_10 = arith.constant 0 : index
    %8 = vector.load %arg2[%c0_8, %c0_9, %c0_10] : memref<3x8x128xf32, #tpu.memory_space<vmem>>, vector<1x8x128xf32>
    %9 = vector.shape_cast %8 : vector<1x8x128xf32> to vector<8x128xf32>
    %c0_11 = arith.constant 0 : index
    %c0_12 = arith.constant 0 : index
    %10 = memref.load %arg3[%c0_11, %c0_12] : memref<3x4xf32, #tpu.memory_space<smem>>
    %11 = vector.broadcast %10 : f32 to vector<8x128xf32>
    %12 = arith.mulf %11, %1 : vector<8x128xf32>
    %13 = arith.subf %9, %12 : vector<8x128xf32>
    %c0_13 = arith.constant 0 : index
    %c1_14 = arith.constant 1 : index
    %14 = memref.load %arg3[%c0_13, %c1_14] : memref<3x4xf32, #tpu.memory_space<smem>>
    %15 = vector.broadcast %14 : f32 to vector<8x128xf32>
    %16 = arith.mulf %15, %3 : vector<8x128xf32>
    %17 = arith.subf %13, %16 : vector<8x128xf32>
    %c0_15 = arith.constant 0 : index
    %c2_16 = arith.constant 2 : index
    %18 = memref.load %arg3[%c0_15, %c2_16] : memref<3x4xf32, #tpu.memory_space<smem>>
    %19 = vector.broadcast %18 : f32 to vector<8x128xf32>
    %20 = arith.mulf %19, %5 : vector<8x128xf32>
    %21 = arith.subf %17, %20 : vector<8x128xf32>
    %c0_17 = arith.constant 0 : index
    %c3_18 = arith.constant 3 : index
    %22 = memref.load %arg3[%c0_17, %c3_18] : memref<3x4xf32, #tpu.memory_space<smem>>
    %23 = vector.broadcast %22 : f32 to vector<8x128xf32>
    %24 = arith.mulf %23, %7 : vector<8x128xf32>
    %25 = arith.subf %21, %24 : vector<8x128xf32>
    %c0_19 = arith.constant 0 : index
    %c0_20 = arith.constant 0 : index
    %c0_21 = arith.constant 0 : index
    %26 = vector.load %arg13[%c0_19, %c0_20, %c0_21] : memref<3x8x128xf32, #tpu.memory_space<vmem>>, vector<1x8x128xf32>
    %27 = vector.shape_cast %26 : vector<1x8x128xf32> to vector<8x128xf32>
    %28 = vector.shape_cast %25 : vector<8x128xf32> to vector<1x8x128xf32>
    tpu.vector_store %arg13[%c0_19, %c0_20, %c0_21], %28 {strides = array<i32>} : memref<3x8x128xf32, #tpu.memory_space<vmem>>, vector<1x8x128xf32>,
    %c1_22 = arith.constant 1 : index
    %c0_23 = arith.constant 0 : index
    %c0_24 = arith.constant 0 : index
    %29 = vector.load %arg2[%c1_22, %c0_23, %c0_24] : memref<3x8x128xf32, #tpu.memory_space<vmem>>, vector<1x8x128xf32>
    %30 = vector.shape_cast %29 : vector<1x8x128xf32> to vector<8x128xf32>
    %c1_25 = arith.constant 1 : index
    %c0_26 = arith.constant 0 : index
    %31 = memref.load %arg3[%c1_25, %c0_26] : memref<3x4xf32, #tpu.memory_space<smem>>
    %32 = vector.broadcast %31 : f32 to vector<8x128xf32>
    %33 = arith.mulf %32, %1 : vector<8x128xf32>
    %34 = arith.subf %30, %33 : vector<8x128xf32>
    %c1_27 = arith.constant 1 : index
    %c1_28 = arith.constant 1 : index
    %35 = memref.load %arg3[%c1_27, %c1_28] : memref<3x4xf32, #tpu.memory_space<smem>>
    %36 = vector.broadcast %35 : f32 to vector<8x128xf32>
    %37 = arith.mulf %36, %3 : vector<8x128xf32>
    %38 = arith.subf %34, %37 : vector<8x128xf32>
    %c1_29 = arith.constant 1 : index
    %c2_30 = arith.constant 2 : index
    %39 = memref.load %arg3[%c1_29, %c2_30] : memref<3x4xf32, #tpu.memory_space<smem>>
    %40 = vector.broadcast %39 : f32 to vector<8x128xf32>
    %41 = arith.mulf %40, %5 : vector<8x128xf32>
    %42 = arith.subf %38, %41 : vector<8x128xf32>
    %c1_31 = arith.constant 1 : index
    %c3_32 = arith.constant 3 : index
    %43 = memref.load %arg3[%c1_31, %c3_32] : memref<3x4xf32, #tpu.memory_space<smem>>
    %44 = vector.broadcast %43 : f32 to vector<8x128xf32>
    %45 = arith.mulf %44, %7 : vector<8x128xf32>
    %46 = arith.subf %42, %45 : vector<8x128xf32>
    %c1_33 = arith.constant 1 : index
    %c0_34 = arith.constant 0 : index
    %c0_35 = arith.constant 0 : index
    %47 = vector.load %arg13[%c1_33, %c0_34, %c0_35] : memref<3x8x128xf32, #tpu.memory_space<vmem>>, vector<1x8x128xf32>
    %48 = vector.shape_cast %47 : vector<1x8x128xf32> to vector<8x128xf32>
    %49 = vector.shape_cast %46 : vector<8x128xf32> to vector<1x8x128xf32>
    tpu.vector_store %arg13[%c1_33, %c0_34, %c0_35], %49 {strides = array<i32>} : memref<3x8x128xf32, #tpu.memory_space<vmem>>, vector<1x8x128xf32>,
    %c2_36 = arith.constant 2 : index
    %c0_37 = arith.constant 0 : index
    %c0_38 = arith.constant 0 : index
    %50 = vector.load %arg2[%c2_36, %c0_37, %c0_38] : memref<3x8x128xf32, #tpu.memory_space<vmem>>, vector<1x8x128xf32>
    %51 = vector.shape_cast %50 : vector<1x8x128xf32> to vector<8x128xf32>
    %c2_39 = arith.constant 2 : index
    %c0_40 = arith.constant 0 : index
    %52 = memref.load %arg3[%c2_39, %c0_40] : memref<3x4xf32, #tpu.memory_space<smem>>
    %53 = vector.broadcast %52 : f32 to vector<8x128xf32>
    %54 = arith.mulf %53, %1 : vector<8x128xf32>
    %55 = arith.subf %51, %54 : vector<8x128xf32>
    %c2_41 = arith.constant 2 : index
    %c1_42 = arith.constant 1 : index
    %56 = memref.load %arg3[%c2_41, %c1_42] : memref<3x4xf32, #tpu.memory_space<smem>>
    %57 = vector.broadcast %56 : f32 to vector<8x128xf32>
    %58 = arith.mulf %57, %3 : vector<8x128xf32>
    %59 = arith.subf %55, %58 : vector<8x128xf32>
    %c2_43 = arith.constant 2 : index
    %c2_44 = arith.constant 2 : index
    %60 = memref.load %arg3[%c2_43, %c2_44] : memref<3x4xf32, #tpu.memory_space<smem>>
    %61 = vector.broadcast %60 : f32 to vector<8x128xf32>
    %62 = arith.mulf %61, %5 : vector<8x128xf32>
    %63 = arith.subf %59, %62 : vector<8x128xf32>
    %c2_45 = arith.constant 2 : index
    %c3_46 = arith.constant 3 : index
    %64 = memref.load %arg3[%c2_45, %c3_46] : memref<3x4xf32, #tpu.memory_space<smem>>
    %65 = vector.broadcast %64 : f32 to vector<8x128xf32>
    %66 = arith.mulf %65, %7 : vector<8x128xf32>
    %67 = arith.subf %63, %66 : vector<8x128xf32>
    %c2_47 = arith.constant 2 : index
    %c0_48 = arith.constant 0 : index
    %c0_49 = arith.constant 0 : index
    %68 = vector.load %arg13[%c2_47, %c0_48, %c0_49] : memref<3x8x128xf32, #tpu.memory_space<vmem>>, vector<1x8x128xf32>
    %69 = vector.shape_cast %68 : vector<1x8x128xf32> to vector<8x128xf32>
    %70 = vector.shape_cast %67 : vector<8x128xf32> to vector<1x8x128xf32>
    tpu.vector_store %arg13[%c2_47, %c0_48, %c0_49], %70 {strides = array<i32>} : memref<3x8x128xf32, #tpu.memory_space<vmem>>, vector<1x8x128xf32>,
    %71 = tpu.iota {dimensions = array<i32: 0>} : vector<9x128xi32>
    %c0_i32 = arith.constant 0 : i32
    %72 = vector.broadcast %c0_i32 : i32 to vector<9x128xi32>
    %73 = arith.cmpi eq, %71, %72 : vector<9x128xi32>
    %cst = arith.constant 0.000000e+00 : f32
    %cst_50 = arith.constant -1.000000e+30 : f32
    %74 = vector.broadcast %cst : f32 to vector<9x128xf32>
    %75 = vector.broadcast %cst_50 : f32 to vector<9x128xf32>
    %76 = arith.select %73, %74, %75 : vector<9x128xi1>, vector<9x128xf32>
    %cst_51 = arith.constant 0.000000e+00 : f32
    %77 = vector.broadcast %cst_51 : f32 to vector<9x128xf32>
    %cst_52 = arith.constant 0.000000e+00 : f32
    %78 = vector.broadcast %cst_52 : f32 to vector<9x128xf32>
    %cst_53 = arith.constant 0.000000e+00 : f32
    %79 = vector.broadcast %cst_53 : f32 to vector<9x128xf32>
    %c0_54 = arith.constant 0 : index
    %c0_55 = arith.constant 0 : index
    %c0_56 = arith.constant 0 : index
    %80 = vector.load %arg10[%c0_54, %c0_55, %c0_56] : memref<8x9x128xf32, #tpu.memory_space<vmem>>, vector<1x9x128xf32>
    %81 = vector.shape_cast %80 : vector<1x9x128xf32> to vector<9x128xf32>
    %82 = vector.shape_cast %76 : vector<9x128xf32> to vector<1x9x128xf32>
    tpu.vector_store %arg10[%c0_54, %c0_55, %c0_56], %82 {strides = array<i32>} : memref<8x9x128xf32, #tpu.memory_space<vmem>>, vector<1x9x128xf32>,
    %c0_57 = arith.constant 0 : index
    %c0_58 = arith.constant 0 : index
    %83 = vector.load %arg4[%c0_57, %c0_58] : memref<9x8xf32, #tpu.memory_space<vmem>>, vector<9x1xf32>
    %c0_59 = arith.constant 0 : index
    %c0_60 = arith.constant 0 : index
    %84 = vector.load %arg5[%c0_59, %c0_60] : memref<9x8xf32, #tpu.memory_space<vmem>>, vector<9x1xf32>
    %c0_61 = arith.constant 0 : index
    %c0_62 = arith.constant 0 : index
    %85 = vector.load %arg6[%c0_61, %c0_62] : memref<9x8xf32, #tpu.memory_space<vmem>>, vector<9x1xf32>
    %c0_63 = arith.constant 0 : index
    %c0_64 = arith.constant 0 : index
    %86 = vector.load %arg7[%c0_63, %c0_64] : memref<9x8xf32, #tpu.memory_space<vmem>>, vector<9x1xf32>
    %cst_65 = arith.constant 0.000000e+00 : f32
    %87 = vector.broadcast %cst_65 : f32 to vector<9x128xf32>
    %c0_66 = arith.constant 0 : index
    %c0_67 = arith.constant 0 : index
    %c0_68 = arith.constant 0 : index
    %88 = vector.load %arg13[%c0_66, %c0_67, %c0_68] : memref<3x8x128xf32, #tpu.memory_space<vmem>>, vector<1x1x128xf32>
    %89 = vector.shape_cast %88 : vector<1x1x128xf32> to vector<1x128xf32>
    %90 = vector.broadcast %89 : vector<1x128xf32> to vector<9x128xf32>
    %91 = arith.subf %90, %77 : vector<9x128xf32>
    %92 = arith.mulf %91, %91 : vector<9x128xf32>
    %93 = arith.addf %87, %92 : vector<9x128xf32>
    %94 = vector.broadcast %85 : vector<9x1xf32> to vector<9x128xf32>
    %95 = arith.mulf %94, %77 : vector<9x128xf32>
    %96 = vector.broadcast %86 : vector<9x1xf32> to vector<9x128xf32>
    %97 = vector.broadcast %89 : vector<1x128xf32> to vector<9x128xf32>
    %98 = arith.mulf %96, %97 : vector<9x128xf32>
    %99 = arith.addf %95, %98 : vector<9x128xf32>
    %c1_69 = arith.constant 1 : index
    %c0_70 = arith.constant 0 : index
    %c0_71 = arith.constant 0 : index
    %100 = vector.load %arg13[%c1_69, %c0_70, %c0_71] : memref<3x8x128xf32, #tpu.memory_space<vmem>>, vector<1x1x128xf32>
    %101 = vector.shape_cast %100 : vector<1x1x128xf32> to vector<1x128xf32>
    %102 = vector.broadcast %101 : vector<1x128xf32> to vector<9x128xf32>
    %103 = arith.subf %102, %78 : vector<9x128xf32>
    %104 = arith.mulf %103, %103 : vector<9x128xf32>
    %105 = arith.addf %93, %104 : vector<9x128xf32>
    %106 = vector.broadcast %85 : vector<9x1xf32> to vector<9x128xf32>
    %107 = arith.mulf %106, %78 : vector<9x128xf32>
    %108 = vector.broadcast %86 : vector<9x1xf32> to vector<9x128xf32>
    %109 = vector.broadcast %101 : vector<1x128xf32> to vector<9x128xf32>
    %110 = arith.mulf %108, %109 : vector<9x128xf32>
    %111 = arith.addf %107, %110 : vector<9x128xf32>
    %c2_72 = arith.constant 2 : index
    %c0_73 = arith.constant 0 : index
    %c0_74 = arith.constant 0 : index
    %112 = vector.load %arg13[%c2_72, %c0_73, %c0_74] : memref<3x8x128xf32, #tpu.memory_space<vmem>>, vector<1x1x128xf32>
    %113 = vector.shape_cast %112 : vector<1x1x128xf32> to vector<1x128xf32>
    %114 = vector.broadcast %113 : vector<1x128xf32> to vector<9x128xf32>
    %115 = arith.subf %114, %79 : vector<9x128xf32>
    %116 = arith.mulf %115, %115 : vector<9x128xf32>
    %117 = arith.addf %105, %116 : vector<9x128xf32>
    %118 = vector.broadcast %85 : vector<9x1xf32> to vector<9x128xf32>
    %119 = arith.mulf %118, %79 : vector<9x128xf32>
    %120 = vector.broadcast %86 : vector<9x1xf32> to vector<9x128xf32>
    %121 = vector.broadcast %113 : vector<1x128xf32> to vector<9x128xf32>
    %122 = arith.mulf %120, %121 : vector<9x128xf32>
    %123 = arith.addf %119, %122 : vector<9x128xf32>
    %124 = vector.broadcast %84 : vector<9x1xf32> to vector<9x128xf32>
    %125 = arith.mulf %124, %117 : vector<9x128xf32>
    %126 = vector.broadcast %83 : vector<9x1xf32> to vector<9x128xf32>
    %127 = arith.subf %126, %125 : vector<9x128xf32>
    %128 = arith.addf %127, %76 : vector<9x128xf32>
    %cst_75 = arith.constant dense<0xFF800000> : vector<128xf32>
    %129 = vector.multi_reduction <maximumf>, %128, %cst_75 [0] : vector<9x128xf32> to vector<128xf32>
    %130 = vector.shape_cast %129 : vector<128xf32> to vector<1x128xf32>
    %131 = vector.broadcast %130 : vector<1x128xf32> to vector<9x128xf32>
    %132 = arith.subf %128, %131 : vector<9x128xf32>
    %133 = math.exp %132 : vector<9x128xf32>
    %cst_76 = arith.constant dense<0.000000e+00> : vector<128xf32>
    %134 = vector.multi_reduction <add>, %133, %cst_76 [0] : vector<9x128xf32> to vector<128xf32>
    %135 = vector.shape_cast %134 : vector<128xf32> to vector<1x128xf32>
    %136 = math.log %135 : vector<1x128xf32>
    %137 = arith.addf %130, %136 : vector<1x128xf32>
    %cst_77 = arith.constant 0.000000e+00 : f32
    %138 = vector.broadcast %cst_77 : f32 to vector<1x128xf32>
    %139 = arith.subf %138, %137 : vector<1x128xf32>
    %c1_i32 = arith.constant 1 : i32
    %140 = vector.broadcast %c1_i32 : i32 to vector<9x128xi32>
    %141 = arith.cmpi eq, %71, %140 : vector<9x128xi32>
    %cst_78 = arith.constant -0.0512932949 : f32
    %142 = vector.broadcast %cst_78 : f32 to vector<9x128xf32>
    %143 = arith.addf %142, %128 : vector<9x128xf32>
    %144 = vector.broadcast %137 : vector<1x128xf32> to vector<9x128xf32>
    %145 = arith.subf %143, %144 : vector<9x128xf32>
    %cst_79 = arith.constant -2.99573231 : f32
    %146 = vector.broadcast %cst_79 : f32 to vector<9x128xf32>
    %147 = arith.select %141, %146, %145 : vector<9x128xi1>, vector<9x128xf32>
    %c1_80 = arith.constant 1 : index
    %c0_81 = arith.constant 0 : index
    %c0_82 = arith.constant 0 : index
    %148 = vector.load %arg10[%c1_80, %c0_81, %c0_82] : memref<8x9x128xf32, #tpu.memory_space<vmem>>, vector<1x9x128xf32>
    %149 = vector.shape_cast %148 : vector<1x9x128xf32> to vector<9x128xf32>
    %150 = vector.shape_cast %147 : vector<9x128xf32> to vector<1x9x128xf32>
    tpu.vector_store %arg10[%c1_80, %c0_81, %c0_82], %150 {strides = array<i32>} : memref<8x9x128xf32, #tpu.memory_space<vmem>>, vector<1x9x128xf32>,
    %c0_83 = arith.constant 0 : index
    %c1_84 = arith.constant 1 : index
    %151 = vector.load %arg4[%c0_83, %c1_84] : memref<9x8xf32, #tpu.memory_space<vmem>>, vector<9x1xf32>
    %c0_85 = arith.constant 0 : index
    %c1_86 = arith.constant 1 : index
    %152 = vector.load %arg5[%c0_85, %c1_86] : memref<9x8xf32, #tpu.memory_space<vmem>>, vector<9x1xf32>
    %c0_87 = arith.constant 0 : index
    %c1_88 = arith.constant 1 : index
    %153 = vector.load %arg6[%c0_87, %c1_88] : memref<9x8xf32, #tpu.memory_space<vmem>>, vector<9x1xf32>
    %c0_89 = arith.constant 0 : index
    %c1_90 = arith.constant 1 : index
    %154 = vector.load %arg7[%c0_89, %c1_90] : memref<9x8xf32, #tpu.memory_space<vmem>>, vector<9x1xf32>
    %cst_91 = arith.constant 0.000000e+00 : f32
    %155 = vector.broadcast %cst_91 : f32 to vector<9x128xf32>
    %c0_92 = arith.constant 0 : index
    %c1_93 = arith.constant 1 : index
    %c0_94 = arith.constant 0 : index
    %156 = vector.load %arg13[%c0_92, %c1_93, %c0_94] : memref<3x8x128xf32, #tpu.memory_space<vmem>>, vector<1x1x128xf32>
    %157 = vector.shape_cast %156 : vector<1x1x128xf32> to vector<1x128xf32>
    %158 = vector.broadcast %157 : vector<1x128xf32> to vector<9x128xf32>
    %159 = arith.subf %158, %99 : vector<9x128xf32>
    %160 = arith.mulf %159, %159 : vector<9x128xf32>
    %161 = arith.addf %155, %160 : vector<9x128xf32>
    %162 = vector.broadcast %153 : vector<9x1xf32> to vector<9x128xf32>
    %163 = arith.mulf %162, %99 : vector<9x128xf32>
    %164 = vector.broadcast %154 : vector<9x1xf32> to vector<9x128xf32>
    %165 = vector.broadcast %157 : vector<1x128xf32> to vector<9x128xf32>
    %166 = arith.mulf %164, %165 : vector<9x128xf32>
    %167 = arith.addf %163, %166 : vector<9x128xf32>
    %c1_95 = arith.constant 1 : index
    %c1_96 = arith.constant 1 : index
    %c0_97 = arith.constant 0 : index
    %168 = vector.load %arg13[%c1_95, %c1_96, %c0_97] : memref<3x8x128xf32, #tpu.memory_space<vmem>>, vector<1x1x128xf32>
    %169 = vector.shape_cast %168 : vector<1x1x128xf32> to vector<1x128xf32>
    %170 = vector.broadcast %169 : vector<1x128xf32> to vector<9x128xf32>
    %171 = arith.subf %170, %111 : vector<9x128xf32>
    %172 = arith.mulf %171, %171 : vector<9x128xf32>
    %173 = arith.addf %161, %172 : vector<9x128xf32>
    %174 = vector.broadcast %153 : vector<9x1xf32> to vector<9x128xf32>
    %175 = arith.mulf %174, %111 : vector<9x128xf32>
    %176 = vector.broadcast %154 : vector<9x1xf32> to vector<9x128xf32>
    %177 = vector.broadcast %169 : vector<1x128xf32> to vector<9x128xf32>
    %178 = arith.mulf %176, %177 : vector<9x128xf32>
    %179 = arith.addf %175, %178 : vector<9x128xf32>
    %c2_98 = arith.constant 2 : index
    %c1_99 = arith.constant 1 : index
    %c0_100 = arith.constant 0 : index
    %180 = vector.load %arg13[%c2_98, %c1_99, %c0_100] : memref<3x8x128xf32, #tpu.memory_space<vmem>>, vector<1x1x128xf32>
    %181 = vector.shape_cast %180 : vector<1x1x128xf32> to vector<1x128xf32>
    %182 = vector.broadcast %181 : vector<1x128xf32> to vector<9x128xf32>
    %183 = arith.subf %182, %123 : vector<9x128xf32>
    %184 = arith.mulf %183, %183 : vector<9x128xf32>
    %185 = arith.addf %173, %184 : vector<9x128xf32>
    %186 = vector.broadcast %153 : vector<9x1xf32> to vector<9x128xf32>
    %187 = arith.mulf %186, %123 : vector<9x128xf32>
    %188 = vector.broadcast %154 : vector<9x1xf32> to vector<9x128xf32>
    %189 = vector.broadcast %181 : vector<1x128xf32> to vector<9x128xf32>
    %190 = arith.mulf %188, %189 : vector<9x128xf32>
    %191 = arith.addf %187, %190 : vector<9x128xf32>
    %192 = vector.broadcast %152 : vector<9x1xf32> to vector<9x128xf32>
    %193 = arith.mulf %192, %185 : vector<9x128xf32>
    %194 = vector.broadcast %151 : vector<9x1xf32> to vector<9x128xf32>
    %195 = arith.subf %194, %193 : vector<9x128xf32>
    %196 = arith.addf %195, %147 : vector<9x128xf32>
    %cst_101 = arith.constant dense<0xFF800000> : vector<128xf32>
    %197 = vector.multi_reduction <maximumf>, %196, %cst_101 [0] : vector<9x128xf32> to vector<128xf32>
    %198 = vector.shape_cast %197 : vector<128xf32> to vector<1x128xf32>
    %199 = vector.broadcast %198 : vector<1x128xf32> to vector<9x128xf32>
    %200 = arith.subf %196, %199 : vector<9x128xf32>
    %201 = math.exp %200 : vector<9x128xf32>
    %cst_102 = arith.constant dense<0.000000e+00> : vector<128xf32>
    %202 = vector.multi_reduction <add>, %201, %cst_102 [0] : vector<9x128xf32> to vector<128xf32>
    %203 = vector.shape_cast %202 : vector<128xf32> to vector<1x128xf32>
    %204 = math.log %203 : vector<1x128xf32>
    %205 = arith.addf %198, %204 : vector<1x128xf32>
    %cst_103 = arith.constant 0.000000e+00 : f32
    %206 = vector.broadcast %cst_103 : f32 to vector<1x128xf32>
    %207 = arith.subf %206, %205 : vector<1x128xf32>
    %c2_i32 = arith.constant 2 : i32
    %208 = vector.broadcast %c2_i32 : i32 to vector<9x128xi32>
    %209 = arith.cmpi eq, %71, %208 : vector<9x128xi32>
    %cst_104 = arith.constant -0.0512932949 : f32
    %210 = vector.broadcast %cst_104 : f32 to vector<9x128xf32>
    %211 = arith.addf %210, %196 : vector<9x128xf32>
    %212 = vector.broadcast %205 : vector<1x128xf32> to vector<9x128xf32>
    %213 = arith.subf %211, %212 : vector<9x128xf32>
    %cst_105 = arith.constant -2.99573231 : f32
    %214 = vector.broadcast %cst_105 : f32 to vector<9x128xf32>
    %215 = arith.select %209, %214, %213 : vector<9x128xi1>, vector<9x128xf32>
    %c2_106 = arith.constant 2 : index
    %c0_107 = arith.constant 0 : index
    %c0_108 = arith.constant 0 : index
    %216 = vector.load %arg10[%c2_106, %c0_107, %c0_108] : memref<8x9x128xf32, #tpu.memory_space<vmem>>, vector<1x9x128xf32>
    %217 = vector.shape_cast %216 : vector<1x9x128xf32> to vector<9x128xf32>
    %218 = vector.shape_cast %215 : vector<9x128xf32> to vector<1x9x128xf32>
    tpu.vector_store %arg10[%c2_106, %c0_107, %c0_108], %218 {strides = array<i32>} : memref<8x9x128xf32, #tpu.memory_space<vmem>>, vector<1x9x128xf32>,
    %c0_109 = arith.constant 0 : index
    %c2_110 = arith.constant 2 : index
    %219 = vector.load %arg4[%c0_109, %c2_110] : memref<9x8xf32, #tpu.memory_space<vmem>>, vector<9x1xf32>
    %c0_111 = arith.constant 0 : index
    %c2_112 = arith.constant 2 : index
    %220 = vector.load %arg5[%c0_111, %c2_112] : memref<9x8xf32, #tpu.memory_space<vmem>>, vector<9x1xf32>
    %c0_113 = arith.constant 0 : index
    %c2_114 = arith.constant 2 : index
    %221 = vector.load %arg6[%c0_113, %c2_114] : memref<9x8xf32, #tpu.memory_space<vmem>>, vector<9x1xf32>
    %c0_115 = arith.constant 0 : index
    %c2_116 = arith.constant 2 : index
    %222 = vector.load %arg7[%c0_115, %c2_116] : memref<9x8xf32, #tpu.memory_space<vmem>>, vector<9x1xf32>
    %cst_117 = arith.constant 0.000000e+00 : f32
    %223 = vector.broadcast %cst_117 : f32 to vector<9x128xf32>
    %c0_118 = arith.constant 0 : index
    %c2_119 = arith.constant 2 : index
    %c0_120 = arith.constant 0 : index
    %224 = vector.load %arg13[%c0_118, %c2_119, %c0_120] : memref<3x8x128xf32, #tpu.memory_space<vmem>>, vector<1x1x128xf32>
    %225 = vector.shape_cast %224 : vector<1x1x128xf32> to vector<1x128xf32>
    %226 = vector.broadcast %225 : vector<1x128xf32> to vector<9x128xf32>
    %227 = arith.subf %226, %167 : vector<9x128xf32>
    %228 = arith.mulf %227, %227 : vector<9x128xf32>
    %229 = arith.addf %223, %228 : vector<9x128xf32>
    %230 = vector.broadcast %221 : vector<9x1xf32> to vector<9x128xf32>
    %231 = arith.mulf %230, %167 : vector<9x128xf32>
    %232 = vector.broadcast %222 : vector<9x1xf32> to vector<9x128xf32>
    %233 = vector.broadcast %225 : vector<1x128xf32> to vector<9x128xf32>
    %234 = arith.mulf %232, %233 : vector<9x128xf32>
    %235 = arith.addf %231, %234 : vector<9x128xf32>
    %c1_121 = arith.constant 1 : index
    %c2_122 = arith.constant 2 : index
    %c0_123 = arith.constant 0 : index
    %236 = vector.load %arg13[%c1_121, %c2_122, %c0_123] : memref<3x8x128xf32, #tpu.memory_space<vmem>>, vector<1x1x128xf32>
    %237 = vector.shape_cast %236 : vector<1x1x128xf32> to vector<1x128xf32>
    %238 = vector.broadcast %237 : vector<1x128xf32> to vector<9x128xf32>
    %239 = arith.subf %238, %179 : vector<9x128xf32>
    %240 = arith.mulf %239, %239 : vector<9x128xf32>
    %241 = arith.addf %229, %240 : vector<9x128xf32>
    %242 = vector.broadcast %221 : vector<9x1xf32> to vector<9x128xf32>
    %243 = arith.mulf %242, %179 : vector<9x128xf32>
    %244 = vector.broadcast %222 : vector<9x1xf32> to vector<9x128xf32>
    %245 = vector.broadcast %237 : vector<1x128xf32> to vector<9x128xf32>
    %246 = arith.mulf %244, %245 : vector<9x128xf32>
    %247 = arith.addf %243, %246 : vector<9x128xf32>
    %c2_124 = arith.constant 2 : index
    %c2_125 = arith.constant 2 : index
    %c0_126 = arith.constant 0 : index
    %248 = vector.load %arg13[%c2_124, %c2_125, %c0_126] : memref<3x8x128xf32, #tpu.memory_space<vmem>>, vector<1x1x128xf32>
    %249 = vector.shape_cast %248 : vector<1x1x128xf32> to vector<1x128xf32>
    %250 = vector.broadcast %249 : vector<1x128xf32> to vector<9x128xf32>
    %251 = arith.subf %250, %191 : vector<9x128xf32>
    %252 = arith.mulf %251, %251 : vector<9x128xf32>
    %253 = arith.addf %241, %252 : vector<9x128xf32>
    %254 = vector.broadcast %221 : vector<9x1xf32> to vector<9x128xf32>
    %255 = arith.mulf %254, %191 : vector<9x128xf32>
    %256 = vector.broadcast %222 : vector<9x1xf32> to vector<9x128xf32>
    %257 = vector.broadcast %249 : vector<1x128xf32> to vector<9x128xf32>
    %258 = arith.mulf %256, %257 : vector<9x128xf32>
    %259 = arith.addf %255, %258 : vector<9x128xf32>
    %260 = vector.broadcast %220 : vector<9x1xf32> to vector<9x128xf32>
    %261 = arith.mulf %260, %253 : vector<9x128xf32>
    %262 = vector.broadcast %219 : vector<9x1xf32> to vector<9x128xf32>
    %263 = arith.subf %262, %261 : vector<9x128xf32>
    %264 = arith.addf %263, %215 : vector<9x128xf32>
    %cst_127 = arith.constant dense<0xFF800000> : vector<128xf32>
    %265 = vector.multi_reduction <maximumf>, %264, %cst_127 [0] : vector<9x128xf32> to vector<128xf32>
    %266 = vector.shape_cast %265 : vector<128xf32> to vector<1x128xf32>
    %267 = vector.broadcast %266 : vector<1x128xf32> to vector<9x128xf32>
    %268 = arith.subf %264, %267 : vector<9x128xf32>
    %269 = math.exp %268 : vector<9x128xf32>
    %cst_128 = arith.constant dense<0.000000e+00> : vector<128xf32>
    %270 = vector.multi_reduction <add>, %269, %cst_128 [0] : vector<9x128xf32> to vector<128xf32>
    %271 = vector.shape_cast %270 : vector<128xf32> to vector<1x128xf32>
    %272 = math.log %271 : vector<1x128xf32>
    %273 = arith.addf %266, %272 : vector<1x128xf32>
    %cst_129 = arith.constant 0.000000e+00 : f32
    %274 = vector.broadcast %cst_129 : f32 to vector<1x128xf32>
    %275 = arith.subf %274, %273 : vector<1x128xf32>
    %c3_i32 = arith.constant 3 : i32
    %276 = vector.broadcast %c3_i32 : i32 to vector<9x128xi32>
    %277 = arith.cmpi eq, %71, %276 : vector<9x128xi32>
    %cst_130 = arith.constant -0.0512932949 : f32
    %278 = vector.broadcast %cst_130 : f32 to vector<9x128xf32>
    %279 = arith.addf %278, %264 : vector<9x128xf32>
    %280 = vector.broadcast %273 : vector<1x128xf32> to vector<9x128xf32>
    %281 = arith.subf %279, %280 : vector<9x128xf32>
    %cst_131 = arith.constant -2.99573231 : f32
    %282 = vector.broadcast %cst_131 : f32 to vector<9x128xf32>
    %283 = arith.select %277, %282, %281 : vector<9x128xi1>, vector<9x128xf32>
    %c3_132 = arith.constant 3 : index
    %c0_133 = arith.constant 0 : index
    %c0_134 = arith.constant 0 : index
    %284 = vector.load %arg10[%c3_132, %c0_133, %c0_134] : memref<8x9x128xf32, #tpu.memory_space<vmem>>, vector<1x9x128xf32>
    %285 = vector.shape_cast %284 : vector<1x9x128xf32> to vector<9x128xf32>
    %286 = vector.shape_cast %283 : vector<9x128xf32> to vector<1x9x128xf32>
    tpu.vector_store %arg10[%c3_132, %c0_133, %c0_134], %286 {strides = array<i32>} : memref<8x9x128xf32, #tpu.memory_space<vmem>>, vector<1x9x128xf32>,
    %c0_135 = arith.constant 0 : index
    %c3_136 = arith.constant 3 : index
    %287 = vector.load %arg4[%c0_135, %c3_136] : memref<9x8xf32, #tpu.memory_space<vmem>>, vector<9x1xf32>
    %c0_137 = arith.constant 0 : index
    %c3_138 = arith.constant 3 : index
    %288 = vector.load %arg5[%c0_137, %c3_138] : memref<9x8xf32, #tpu.memory_space<vmem>>, vector<9x1xf32>
    %c0_139 = arith.constant 0 : index
    %c3_140 = arith.constant 3 : index
    %289 = vector.load %arg6[%c0_139, %c3_140] : memref<9x8xf32, #tpu.memory_space<vmem>>, vector<9x1xf32>
    %c0_141 = arith.constant 0 : index
    %c3_142 = arith.constant 3 : index
    %290 = vector.load %arg7[%c0_141, %c3_142] : memref<9x8xf32, #tpu.memory_space<vmem>>, vector<9x1xf32>
    %cst_143 = arith.constant 0.000000e+00 : f32
    %291 = vector.broadcast %cst_143 : f32 to vector<9x128xf32>
    %c0_144 = arith.constant 0 : index
    %c3_145 = arith.constant 3 : index
    %c0_146 = arith.constant 0 : index
    %292 = vector.load %arg13[%c0_144, %c3_145, %c0_146] : memref<3x8x128xf32, #tpu.memory_space<vmem>>, vector<1x1x128xf32>
    %293 = vector.shape_cast %292 : vector<1x1x128xf32> to vector<1x128xf32>
    %294 = vector.broadcast %293 : vector<1x128xf32> to vector<9x128xf32>
    %295 = arith.subf %294, %235 : vector<9x128xf32>
    %296 = arith.mulf %295, %295 : vector<9x128xf32>
    %297 = arith.addf %291, %296 : vector<9x128xf32>
    %298 = vector.broadcast %289 : vector<9x1xf32> to vector<9x128xf32>
    %299 = arith.mulf %298, %235 : vector<9x128xf32>
    %300 = vector.broadcast %290 : vector<9x1xf32> to vector<9x128xf32>
    %301 = vector.broadcast %293 : vector<1x128xf32> to vector<9x128xf32>
    %302 = arith.mulf %300, %301 : vector<9x128xf32>
    %303 = arith.addf %299, %302 : vector<9x128xf32>
    %c1_147 = arith.constant 1 : index
    %c3_148 = arith.constant 3 : index
    %c0_149 = arith.constant 0 : index
    %304 = vector.load %arg13[%c1_147, %c3_148, %c0_149] : memref<3x8x128xf32, #tpu.memory_space<vmem>>, vector<1x1x128xf32>
    %305 = vector.shape_cast %304 : vector<1x1x128xf32> to vector<1x128xf32>
    %306 = vector.broadcast %305 : vector<1x128xf32> to vector<9x128xf32>
    %307 = arith.subf %306, %247 : vector<9x128xf32>
    %308 = arith.mulf %307, %307 : vector<9x128xf32>
    %309 = arith.addf %297, %308 : vector<9x128xf32>
    %310 = vector.broadcast %289 : vector<9x1xf32> to vector<9x128xf32>
    %311 = arith.mulf %310, %247 : vector<9x128xf32>
    %312 = vector.broadcast %290 : vector<9x1xf32> to vector<9x128xf32>
    %313 = vector.broadcast %305 : vector<1x128xf32> to vector<9x128xf32>
    %314 = arith.mulf %312, %313 : vector<9x128xf32>
    %315 = arith.addf %311, %314 : vector<9x128xf32>
    %c2_150 = arith.constant 2 : index
    %c3_151 = arith.constant 3 : index
    %c0_152 = arith.constant 0 : index
    %316 = vector.load %arg13[%c2_150, %c3_151, %c0_152] : memref<3x8x128xf32, #tpu.memory_space<vmem>>, vector<1x1x128xf32>
    %317 = vector.shape_cast %316 : vector<1x1x128xf32> to vector<1x128xf32>
    %318 = vector.broadcast %317 : vector<1x128xf32> to vector<9x128xf32>
    %319 = arith.subf %318, %259 : vector<9x128xf32>
    %320 = arith.mulf %319, %319 : vector<9x128xf32>
    %321 = arith.addf %309, %320 : vector<9x128xf32>
    %322 = vector.broadcast %289 : vector<9x1xf32> to vector<9x128xf32>
    %323 = arith.mulf %322, %259 : vector<9x128xf32>
    %324 = vector.broadcast %290 : vector<9x1xf32> to vector<9x128xf32>
    %325 = vector.broadcast %317 : vector<1x128xf32> to vector<9x128xf32>
    %326 = arith.mulf %324, %325 : vector<9x128xf32>
    %327 = arith.addf %323, %326 : vector<9x128xf32>
    %328 = vector.broadcast %288 : vector<9x1xf32> to vector<9x128xf32>
    %329 = arith.mulf %328, %321 : vector<9x128xf32>
    %330 = vector.broadcast %287 : vector<9x1xf32> to vector<9x128xf32>
    %331 = arith.subf %330, %329 : vector<9x128xf32>
    %332 = arith.addf %331, %283 : vector<9x128xf32>
    %cst_153 = arith.constant dense<0xFF800000> : vector<128xf32>
    %333 = vector.multi_reduction <maximumf>, %332, %cst_153 [0] : vector<9x128xf32> to vector<128xf32>
    %334 = vector.shape_cast %333 : vector<128xf32> to vector<1x128xf32>
    %335 = vector.broadcast %334 : vector<1x128xf32> to vector<9x128xf32>
    %336 = arith.subf %332, %335 : vector<9x128xf32>
    %337 = math.exp %336 : vector<9x128xf32>
    %cst_154 = arith.constant dense<0.000000e+00> : vector<128xf32>
    %338 = vector.multi_reduction <add>, %337, %cst_154 [0] : vector<9x128xf32> to vector<128xf32>
    %339 = vector.shape_cast %338 : vector<128xf32> to vector<1x128xf32>
    %340 = math.log %339 : vector<1x128xf32>
    %341 = arith.addf %334, %340 : vector<1x128xf32>
    %cst_155 = arith.constant 0.000000e+00 : f32
    %342 = vector.broadcast %cst_155 : f32 to vector<1x128xf32>
    %343 = arith.subf %342, %341 : vector<1x128xf32>
    %c4_i32 = arith.constant 4 : i32
    %344 = vector.broadcast %c4_i32 : i32 to vector<9x128xi32>
    %345 = arith.cmpi eq, %71, %344 : vector<9x128xi32>
    %cst_156 = arith.constant -0.0512932949 : f32
    %346 = vector.broadcast %cst_156 : f32 to vector<9x128xf32>
    %347 = arith.addf %346, %332 : vector<9x128xf32>
    %348 = vector.broadcast %341 : vector<1x128xf32> to vector<9x128xf32>
    %349 = arith.subf %347, %348 : vector<9x128xf32>
    %cst_157 = arith.constant -2.99573231 : f32
    %350 = vector.broadcast %cst_157 : f32 to vector<9x128xf32>
    %351 = arith.select %345, %350, %349 : vector<9x128xi1>, vector<9x128xf32>
    %c4 = arith.constant 4 : index
    %c0_158 = arith.constant 0 : index
    %c0_159 = arith.constant 0 : index
    %352 = vector.load %arg10[%c4, %c0_158, %c0_159] : memref<8x9x128xf32, #tpu.memory_space<vmem>>, vector<1x9x128xf32>
    %353 = vector.shape_cast %352 : vector<1x9x128xf32> to vector<9x128xf32>
    %354 = vector.shape_cast %351 : vector<9x128xf32> to vector<1x9x128xf32>
    tpu.vector_store %arg10[%c4, %c0_158, %c0_159], %354 {strides = array<i32>} : memref<8x9x128xf32, #tpu.memory_space<vmem>>, vector<1x9x128xf32>,
    %c0_160 = arith.constant 0 : index
    %c4_161 = arith.constant 4 : index
    %355 = vector.load %arg4[%c0_160, %c4_161] : memref<9x8xf32, #tpu.memory_space<vmem>>, vector<9x1xf32>
    %c0_162 = arith.constant 0 : index
    %c4_163 = arith.constant 4 : index
    %356 = vector.load %arg5[%c0_162, %c4_163] : memref<9x8xf32, #tpu.memory_space<vmem>>, vector<9x1xf32>
    %c0_164 = arith.constant 0 : index
    %c4_165 = arith.constant 4 : index
    %357 = vector.load %arg6[%c0_164, %c4_165] : memref<9x8xf32, #tpu.memory_space<vmem>>, vector<9x1xf32>
    %c0_166 = arith.constant 0 : index
    %c4_167 = arith.constant 4 : index
    %358 = vector.load %arg7[%c0_166, %c4_167] : memref<9x8xf32, #tpu.memory_space<vmem>>, vector<9x1xf32>
    %cst_168 = arith.constant 0.000000e+00 : f32
    %359 = vector.broadcast %cst_168 : f32 to vector<9x128xf32>
    %c0_169 = arith.constant 0 : index
    %c4_170 = arith.constant 4 : index
    %c0_171 = arith.constant 0 : index
    %360 = vector.load %arg13[%c0_169, %c4_170, %c0_171] : memref<3x8x128xf32, #tpu.memory_space<vmem>>, vector<1x1x128xf32>
    %361 = vector.shape_cast %360 : vector<1x1x128xf32> to vector<1x128xf32>
    %362 = vector.broadcast %361 : vector<1x128xf32> to vector<9x128xf32>
    %363 = arith.subf %362, %303 : vector<9x128xf32>
    %364 = arith.mulf %363, %363 : vector<9x128xf32>
    %365 = arith.addf %359, %364 : vector<9x128xf32>
    %366 = vector.broadcast %357 : vector<9x1xf32> to vector<9x128xf32>
    %367 = arith.mulf %366, %303 : vector<9x128xf32>
    %368 = vector.broadcast %358 : vector<9x1xf32> to vector<9x128xf32>
    %369 = vector.broadcast %361 : vector<1x128xf32> to vector<9x128xf32>
    %370 = arith.mulf %368, %369 : vector<9x128xf32>
    %371 = arith.addf %367, %370 : vector<9x128xf32>
    %c1_172 = arith.constant 1 : index
    %c4_173 = arith.constant 4 : index
    %c0_174 = arith.constant 0 : index
    %372 = vector.load %arg13[%c1_172, %c4_173, %c0_174] : memref<3x8x128xf32, #tpu.memory_space<vmem>>, vector<1x1x128xf32>
    %373 = vector.shape_cast %372 : vector<1x1x128xf32> to vector<1x128xf32>
    %374 = vector.broadcast %373 : vector<1x128xf32> to vector<9x128xf32>
    %375 = arith.subf %374, %315 : vector<9x128xf32>
    %376 = arith.mulf %375, %375 : vector<9x128xf32>
    %377 = arith.addf %365, %376 : vector<9x128xf32>
    %378 = vector.broadcast %357 : vector<9x1xf32> to vector<9x128xf32>
    %379 = arith.mulf %378, %315 : vector<9x128xf32>
    %380 = vector.broadcast %358 : vector<9x1xf32> to vector<9x128xf32>
    %381 = vector.broadcast %373 : vector<1x128xf32> to vector<9x128xf32>
    %382 = arith.mulf %380, %381 : vector<9x128xf32>
    %383 = arith.addf %379, %382 : vector<9x128xf32>
    %c2_175 = arith.constant 2 : index
    %c4_176 = arith.constant 4 : index
    %c0_177 = arith.constant 0 : index
    %384 = vector.load %arg13[%c2_175, %c4_176, %c0_177] : memref<3x8x128xf32, #tpu.memory_space<vmem>>, vector<1x1x128xf32>
    %385 = vector.shape_cast %384 : vector<1x1x128xf32> to vector<1x128xf32>
    %386 = vector.broadcast %385 : vector<1x128xf32> to vector<9x128xf32>
    %387 = arith.subf %386, %327 : vector<9x128xf32>
    %388 = arith.mulf %387, %387 : vector<9x128xf32>
    %389 = arith.addf %377, %388 : vector<9x128xf32>
    %390 = vector.broadcast %357 : vector<9x1xf32> to vector<9x128xf32>
    %391 = arith.mulf %390, %327 : vector<9x128xf32>
    %392 = vector.broadcast %358 : vector<9x1xf32> to vector<9x128xf32>
    %393 = vector.broadcast %385 : vector<1x128xf32> to vector<9x128xf32>
    %394 = arith.mulf %392, %393 : vector<9x128xf32>
    %395 = arith.addf %391, %394 : vector<9x128xf32>
    %396 = vector.broadcast %356 : vector<9x1xf32> to vector<9x128xf32>
    %397 = arith.mulf %396, %389 : vector<9x128xf32>
    %398 = vector.broadcast %355 : vector<9x1xf32> to vector<9x128xf32>
    %399 = arith.subf %398, %397 : vector<9x128xf32>
    %400 = arith.addf %399, %351 : vector<9x128xf32>
    %cst_178 = arith.constant dense<0xFF800000> : vector<128xf32>
    %401 = vector.multi_reduction <maximumf>, %400, %cst_178 [0] : vector<9x128xf32> to vector<128xf32>
    %402 = vector.shape_cast %401 : vector<128xf32> to vector<1x128xf32>
    %403 = vector.broadcast %402 : vector<1x128xf32> to vector<9x128xf32>
    %404 = arith.subf %400, %403 : vector<9x128xf32>
    %405 = math.exp %404 : vector<9x128xf32>
    %cst_179 = arith.constant dense<0.000000e+00> : vector<128xf32>
    %406 = vector.multi_reduction <add>, %405, %cst_179 [0] : vector<9x128xf32> to vector<128xf32>
    %407 = vector.shape_cast %406 : vector<128xf32> to vector<1x128xf32>
    %408 = math.log %407 : vector<1x128xf32>
    %409 = arith.addf %402, %408 : vector<1x128xf32>
    %cst_180 = arith.constant 0.000000e+00 : f32
    %410 = vector.broadcast %cst_180 : f32 to vector<1x128xf32>
    %411 = arith.subf %410, %409 : vector<1x128xf32>
    %c5_i32 = arith.constant 5 : i32
    %412 = vector.broadcast %c5_i32 : i32 to vector<9x128xi32>
    %413 = arith.cmpi eq, %71, %412 : vector<9x128xi32>
    %cst_181 = arith.constant -0.0512932949 : f32
    %414 = vector.broadcast %cst_181 : f32 to vector<9x128xf32>
    %415 = arith.addf %414, %400 : vector<9x128xf32>
    %416 = vector.broadcast %409 : vector<1x128xf32> to vector<9x128xf32>
    %417 = arith.subf %415, %416 : vector<9x128xf32>
    %cst_182 = arith.constant -2.99573231 : f32
    %418 = vector.broadcast %cst_182 : f32 to vector<9x128xf32>
    %419 = arith.select %413, %418, %417 : vector<9x128xi1>, vector<9x128xf32>
    %c5 = arith.constant 5 : index
    %c0_183 = arith.constant 0 : index
    %c0_184 = arith.constant 0 : index
    %420 = vector.load %arg10[%c5, %c0_183, %c0_184] : memref<8x9x128xf32, #tpu.memory_space<vmem>>, vector<1x9x128xf32>
    %421 = vector.shape_cast %420 : vector<1x9x128xf32> to vector<9x128xf32>
    %422 = vector.shape_cast %419 : vector<9x128xf32> to vector<1x9x128xf32>
    tpu.vector_store %arg10[%c5, %c0_183, %c0_184], %422 {strides = array<i32>} : memref<8x9x128xf32, #tpu.memory_space<vmem>>, vector<1x9x128xf32>,
    %c0_185 = arith.constant 0 : index
    %c5_186 = arith.constant 5 : index
    %423 = vector.load %arg4[%c0_185, %c5_186] : memref<9x8xf32, #tpu.memory_space<vmem>>, vector<9x1xf32>
    %c0_187 = arith.constant 0 : index
    %c5_188 = arith.constant 5 : index
    %424 = vector.load %arg5[%c0_187, %c5_188] : memref<9x8xf32, #tpu.memory_space<vmem>>, vector<9x1xf32>
    %c0_189 = arith.constant 0 : index
    %c5_190 = arith.constant 5 : index
    %425 = vector.load %arg6[%c0_189, %c5_190] : memref<9x8xf32, #tpu.memory_space<vmem>>, vector<9x1xf32>
    %c0_191 = arith.constant 0 : index
    %c5_192 = arith.constant 5 : index
    %426 = vector.load %arg7[%c0_191, %c5_192] : memref<9x8xf32, #tpu.memory_space<vmem>>, vector<9x1xf32>
    %cst_193 = arith.constant 0.000000e+00 : f32
    %427 = vector.broadcast %cst_193 : f32 to vector<9x128xf32>
    %c0_194 = arith.constant 0 : index
    %c5_195 = arith.constant 5 : index
    %c0_196 = arith.constant 0 : index
    %428 = vector.load %arg13[%c0_194, %c5_195, %c0_196] : memref<3x8x128xf32, #tpu.memory_space<vmem>>, vector<1x1x128xf32>
    %429 = vector.shape_cast %428 : vector<1x1x128xf32> to vector<1x128xf32>
    %430 = vector.broadcast %429 : vector<1x128xf32> to vector<9x128xf32>
    %431 = arith.subf %430, %371 : vector<9x128xf32>
    %432 = arith.mulf %431, %431 : vector<9x128xf32>
    %433 = arith.addf %427, %432 : vector<9x128xf32>
    %434 = vector.broadcast %425 : vector<9x1xf32> to vector<9x128xf32>
    %435 = arith.mulf %434, %371 : vector<9x128xf32>
    %436 = vector.broadcast %426 : vector<9x1xf32> to vector<9x128xf32>
    %437 = vector.broadcast %429 : vector<1x128xf32> to vector<9x128xf32>
    %438 = arith.mulf %436, %437 : vector<9x128xf32>
    %439 = arith.addf %435, %438 : vector<9x128xf32>
    %c1_197 = arith.constant 1 : index
    %c5_198 = arith.constant 5 : index
    %c0_199 = arith.constant 0 : index
    %440 = vector.load %arg13[%c1_197, %c5_198, %c0_199] : memref<3x8x128xf32, #tpu.memory_space<vmem>>, vector<1x1x128xf32>
    %441 = vector.shape_cast %440 : vector<1x1x128xf32> to vector<1x128xf32>
    %442 = vector.broadcast %441 : vector<1x128xf32> to vector<9x128xf32>
    %443 = arith.subf %442, %383 : vector<9x128xf32>
    %444 = arith.mulf %443, %443 : vector<9x128xf32>
    %445 = arith.addf %433, %444 : vector<9x128xf32>
    %446 = vector.broadcast %425 : vector<9x1xf32> to vector<9x128xf32>
    %447 = arith.mulf %446, %383 : vector<9x128xf32>
    %448 = vector.broadcast %426 : vector<9x1xf32> to vector<9x128xf32>
    %449 = vector.broadcast %441 : vector<1x128xf32> to vector<9x128xf32>
    %450 = arith.mulf %448, %449 : vector<9x128xf32>
    %451 = arith.addf %447, %450 : vector<9x128xf32>
    %c2_200 = arith.constant 2 : index
    %c5_201 = arith.constant 5 : index
    %c0_202 = arith.constant 0 : index
    %452 = vector.load %arg13[%c2_200, %c5_201, %c0_202] : memref<3x8x128xf32, #tpu.memory_space<vmem>>, vector<1x1x128xf32>
    %453 = vector.shape_cast %452 : vector<1x1x128xf32> to vector<1x128xf32>
    %454 = vector.broadcast %453 : vector<1x128xf32> to vector<9x128xf32>
    %455 = arith.subf %454, %395 : vector<9x128xf32>
    %456 = arith.mulf %455, %455 : vector<9x128xf32>
    %457 = arith.addf %445, %456 : vector<9x128xf32>
    %458 = vector.broadcast %425 : vector<9x1xf32> to vector<9x128xf32>
    %459 = arith.mulf %458, %395 : vector<9x128xf32>
    %460 = vector.broadcast %426 : vector<9x1xf32> to vector<9x128xf32>
    %461 = vector.broadcast %453 : vector<1x128xf32> to vector<9x128xf32>
    %462 = arith.mulf %460, %461 : vector<9x128xf32>
    %463 = arith.addf %459, %462 : vector<9x128xf32>
    %464 = vector.broadcast %424 : vector<9x1xf32> to vector<9x128xf32>
    %465 = arith.mulf %464, %457 : vector<9x128xf32>
    %466 = vector.broadcast %423 : vector<9x1xf32> to vector<9x128xf32>
    %467 = arith.subf %466, %465 : vector<9x128xf32>
    %468 = arith.addf %467, %419 : vector<9x128xf32>
    %cst_203 = arith.constant dense<0xFF800000> : vector<128xf32>
    %469 = vector.multi_reduction <maximumf>, %468, %cst_203 [0] : vector<9x128xf32> to vector<128xf32>
    %470 = vector.shape_cast %469 : vector<128xf32> to vector<1x128xf32>
    %471 = vector.broadcast %470 : vector<1x128xf32> to vector<9x128xf32>
    %472 = arith.subf %468, %471 : vector<9x128xf32>
    %473 = math.exp %472 : vector<9x128xf32>
    %cst_204 = arith.constant dense<0.000000e+00> : vector<128xf32>
    %474 = vector.multi_reduction <add>, %473, %cst_204 [0] : vector<9x128xf32> to vector<128xf32>
    %475 = vector.shape_cast %474 : vector<128xf32> to vector<1x128xf32>
    %476 = math.log %475 : vector<1x128xf32>
    %477 = arith.addf %470, %476 : vector<1x128xf32>
    %cst_205 = arith.constant 0.000000e+00 : f32
    %478 = vector.broadcast %cst_205 : f32 to vector<1x128xf32>
    %479 = arith.subf %478, %477 : vector<1x128xf32>
    %c6_i32 = arith.constant 6 : i32
    %480 = vector.broadcast %c6_i32 : i32 to vector<9x128xi32>
    %481 = arith.cmpi eq, %71, %480 : vector<9x128xi32>
    %cst_206 = arith.constant -0.0512932949 : f32
    %482 = vector.broadcast %cst_206 : f32 to vector<9x128xf32>
    %483 = arith.addf %482, %468 : vector<9x128xf32>
    %484 = vector.broadcast %477 : vector<1x128xf32> to vector<9x128xf32>
    %485 = arith.subf %483, %484 : vector<9x128xf32>
    %cst_207 = arith.constant -2.99573231 : f32
    %486 = vector.broadcast %cst_207 : f32 to vector<9x128xf32>
    %487 = arith.select %481, %486, %485 : vector<9x128xi1>, vector<9x128xf32>
    %c6 = arith.constant 6 : index
    %c0_208 = arith.constant 0 : index
    %c0_209 = arith.constant 0 : index
    %488 = vector.load %arg10[%c6, %c0_208, %c0_209] : memref<8x9x128xf32, #tpu.memory_space<vmem>>, vector<1x9x128xf32>
    %489 = vector.shape_cast %488 : vector<1x9x128xf32> to vector<9x128xf32>
    %490 = vector.shape_cast %487 : vector<9x128xf32> to vector<1x9x128xf32>
    tpu.vector_store %arg10[%c6, %c0_208, %c0_209], %490 {strides = array<i32>} : memref<8x9x128xf32, #tpu.memory_space<vmem>>, vector<1x9x128xf32>,
    %c0_210 = arith.constant 0 : index
    %c6_211 = arith.constant 6 : index
    %491 = vector.load %arg4[%c0_210, %c6_211] : memref<9x8xf32, #tpu.memory_space<vmem>>, vector<9x1xf32>
    %c0_212 = arith.constant 0 : index
    %c6_213 = arith.constant 6 : index
    %492 = vector.load %arg5[%c0_212, %c6_213] : memref<9x8xf32, #tpu.memory_space<vmem>>, vector<9x1xf32>
    %c0_214 = arith.constant 0 : index
    %c6_215 = arith.constant 6 : index
    %493 = vector.load %arg6[%c0_214, %c6_215] : memref<9x8xf32, #tpu.memory_space<vmem>>, vector<9x1xf32>
    %c0_216 = arith.constant 0 : index
    %c6_217 = arith.constant 6 : index
    %494 = vector.load %arg7[%c0_216, %c6_217] : memref<9x8xf32, #tpu.memory_space<vmem>>, vector<9x1xf32>
    %cst_218 = arith.constant 0.000000e+00 : f32
    %495 = vector.broadcast %cst_218 : f32 to vector<9x128xf32>
    %c0_219 = arith.constant 0 : index
    %c6_220 = arith.constant 6 : index
    %c0_221 = arith.constant 0 : index
    %496 = vector.load %arg13[%c0_219, %c6_220, %c0_221] : memref<3x8x128xf32, #tpu.memory_space<vmem>>, vector<1x1x128xf32>
    %497 = vector.shape_cast %496 : vector<1x1x128xf32> to vector<1x128xf32>
    %498 = vector.broadcast %497 : vector<1x128xf32> to vector<9x128xf32>
    %499 = arith.subf %498, %439 : vector<9x128xf32>
    %500 = arith.mulf %499, %499 : vector<9x128xf32>
    %501 = arith.addf %495, %500 : vector<9x128xf32>
    %502 = vector.broadcast %493 : vector<9x1xf32> to vector<9x128xf32>
    %503 = arith.mulf %502, %439 : vector<9x128xf32>
    %504 = vector.broadcast %494 : vector<9x1xf32> to vector<9x128xf32>
    %505 = vector.broadcast %497 : vector<1x128xf32> to vector<9x128xf32>
    %506 = arith.mulf %504, %505 : vector<9x128xf32>
    %507 = arith.addf %503, %506 : vector<9x128xf32>
    %c1_222 = arith.constant 1 : index
    %c6_223 = arith.constant 6 : index
    %c0_224 = arith.constant 0 : index
    %508 = vector.load %arg13[%c1_222, %c6_223, %c0_224] : memref<3x8x128xf32, #tpu.memory_space<vmem>>, vector<1x1x128xf32>
    %509 = vector.shape_cast %508 : vector<1x1x128xf32> to vector<1x128xf32>
    %510 = vector.broadcast %509 : vector<1x128xf32> to vector<9x128xf32>
    %511 = arith.subf %510, %451 : vector<9x128xf32>
    %512 = arith.mulf %511, %511 : vector<9x128xf32>
    %513 = arith.addf %501, %512 : vector<9x128xf32>
    %514 = vector.broadcast %493 : vector<9x1xf32> to vector<9x128xf32>
    %515 = arith.mulf %514, %451 : vector<9x128xf32>
    %516 = vector.broadcast %494 : vector<9x1xf32> to vector<9x128xf32>
    %517 = vector.broadcast %509 : vector<1x128xf32> to vector<9x128xf32>
    %518 = arith.mulf %516, %517 : vector<9x128xf32>
    %519 = arith.addf %515, %518 : vector<9x128xf32>
    %c2_225 = arith.constant 2 : index
    %c6_226 = arith.constant 6 : index
    %c0_227 = arith.constant 0 : index
    %520 = vector.load %arg13[%c2_225, %c6_226, %c0_227] : memref<3x8x128xf32, #tpu.memory_space<vmem>>, vector<1x1x128xf32>
    %521 = vector.shape_cast %520 : vector<1x1x128xf32> to vector<1x128xf32>
    %522 = vector.broadcast %521 : vector<1x128xf32> to vector<9x128xf32>
    %523 = arith.subf %522, %463 : vector<9x128xf32>
    %524 = arith.mulf %523, %523 : vector<9x128xf32>
    %525 = arith.addf %513, %524 : vector<9x128xf32>
    %526 = vector.broadcast %493 : vector<9x1xf32> to vector<9x128xf32>
    %527 = arith.mulf %526, %463 : vector<9x128xf32>
    %528 = vector.broadcast %494 : vector<9x1xf32> to vector<9x128xf32>
    %529 = vector.broadcast %521 : vector<1x128xf32> to vector<9x128xf32>
    %530 = arith.mulf %528, %529 : vector<9x128xf32>
    %531 = arith.addf %527, %530 : vector<9x128xf32>
    %532 = vector.broadcast %492 : vector<9x1xf32> to vector<9x128xf32>
    %533 = arith.mulf %532, %525 : vector<9x128xf32>
    %534 = vector.broadcast %491 : vector<9x1xf32> to vector<9x128xf32>
    %535 = arith.subf %534, %533 : vector<9x128xf32>
    %536 = arith.addf %535, %487 : vector<9x128xf32>
    %cst_228 = arith.constant dense<0xFF800000> : vector<128xf32>
    %537 = vector.multi_reduction <maximumf>, %536, %cst_228 [0] : vector<9x128xf32> to vector<128xf32>
    %538 = vector.shape_cast %537 : vector<128xf32> to vector<1x128xf32>
    %539 = vector.broadcast %538 : vector<1x128xf32> to vector<9x128xf32>
    %540 = arith.subf %536, %539 : vector<9x128xf32>
    %541 = math.exp %540 : vector<9x128xf32>
    %cst_229 = arith.constant dense<0.000000e+00> : vector<128xf32>
    %542 = vector.multi_reduction <add>, %541, %cst_229 [0] : vector<9x128xf32> to vector<128xf32>
    %543 = vector.shape_cast %542 : vector<128xf32> to vector<1x128xf32>
    %544 = math.log %543 : vector<1x128xf32>
    %545 = arith.addf %538, %544 : vector<1x128xf32>
    %cst_230 = arith.constant 0.000000e+00 : f32
    %546 = vector.broadcast %cst_230 : f32 to vector<1x128xf32>
    %547 = arith.subf %546, %545 : vector<1x128xf32>
    %c7_i32 = arith.constant 7 : i32
    %548 = vector.broadcast %c7_i32 : i32 to vector<9x128xi32>
    %549 = arith.cmpi eq, %71, %548 : vector<9x128xi32>
    %cst_231 = arith.constant -0.0512932949 : f32
    %550 = vector.broadcast %cst_231 : f32 to vector<9x128xf32>
    %551 = arith.addf %550, %536 : vector<9x128xf32>
    %552 = vector.broadcast %545 : vector<1x128xf32> to vector<9x128xf32>
    %553 = arith.subf %551, %552 : vector<9x128xf32>
    %cst_232 = arith.constant -2.99573231 : f32
    %554 = vector.broadcast %cst_232 : f32 to vector<9x128xf32>
    %555 = arith.select %549, %554, %553 : vector<9x128xi1>, vector<9x128xf32>
    %c7 = arith.constant 7 : index
    %c0_233 = arith.constant 0 : index
    %c0_234 = arith.constant 0 : index
    %556 = vector.load %arg10[%c7, %c0_233, %c0_234] : memref<8x9x128xf32, #tpu.memory_space<vmem>>, vector<1x9x128xf32>
    %557 = vector.shape_cast %556 : vector<1x9x128xf32> to vector<9x128xf32>
    %558 = vector.shape_cast %555 : vector<9x128xf32> to vector<1x9x128xf32>
    tpu.vector_store %arg10[%c7, %c0_233, %c0_234], %558 {strides = array<i32>} : memref<8x9x128xf32, #tpu.memory_space<vmem>>, vector<1x9x128xf32>,
    %c0_235 = arith.constant 0 : index
    %c7_236 = arith.constant 7 : index
    %559 = vector.load %arg4[%c0_235, %c7_236] : memref<9x8xf32, #tpu.memory_space<vmem>>, vector<9x1xf32>
    %c0_237 = arith.constant 0 : index
    %c7_238 = arith.constant 7 : index
    %560 = vector.load %arg5[%c0_237, %c7_238] : memref<9x8xf32, #tpu.memory_space<vmem>>, vector<9x1xf32>
    %c0_239 = arith.constant 0 : index
    %c7_240 = arith.constant 7 : index
    %561 = vector.load %arg6[%c0_239, %c7_240] : memref<9x8xf32, #tpu.memory_space<vmem>>, vector<9x1xf32>
    %c0_241 = arith.constant 0 : index
    %c7_242 = arith.constant 7 : index
    %562 = vector.load %arg7[%c0_241, %c7_242] : memref<9x8xf32, #tpu.memory_space<vmem>>, vector<9x1xf32>
    %cst_243 = arith.constant 0.000000e+00 : f32
    %563 = vector.broadcast %cst_243 : f32 to vector<9x128xf32>
    %c0_244 = arith.constant 0 : index
    %c7_245 = arith.constant 7 : index
    %c0_246 = arith.constant 0 : index
    %564 = vector.load %arg13[%c0_244, %c7_245, %c0_246] : memref<3x8x128xf32, #tpu.memory_space<vmem>>, vector<1x1x128xf32>
    %565 = vector.shape_cast %564 : vector<1x1x128xf32> to vector<1x128xf32>
    %566 = vector.broadcast %565 : vector<1x128xf32> to vector<9x128xf32>
    %567 = arith.subf %566, %507 : vector<9x128xf32>
    %568 = arith.mulf %567, %567 : vector<9x128xf32>
    %569 = arith.addf %563, %568 : vector<9x128xf32>
    %570 = vector.broadcast %561 : vector<9x1xf32> to vector<9x128xf32>
    %571 = arith.mulf %570, %507 : vector<9x128xf32>
    %572 = vector.broadcast %562 : vector<9x1xf32> to vector<9x128xf32>
    %573 = vector.broadcast %565 : vector<1x128xf32> to vector<9x128xf32>
    %574 = arith.mulf %572, %573 : vector<9x128xf32>
    %575 = arith.addf %571, %574 : vector<9x128xf32>
    %c1_247 = arith.constant 1 : index
    %c7_248 = arith.constant 7 : index
    %c0_249 = arith.constant 0 : index
    %576 = vector.load %arg13[%c1_247, %c7_248, %c0_249] : memref<3x8x128xf32, #tpu.memory_space<vmem>>, vector<1x1x128xf32>
    %577 = vector.shape_cast %576 : vector<1x1x128xf32> to vector<1x128xf32>
    %578 = vector.broadcast %577 : vector<1x128xf32> to vector<9x128xf32>
    %579 = arith.subf %578, %519 : vector<9x128xf32>
    %580 = arith.mulf %579, %579 : vector<9x128xf32>
    %581 = arith.addf %569, %580 : vector<9x128xf32>
    %582 = vector.broadcast %561 : vector<9x1xf32> to vector<9x128xf32>
    %583 = arith.mulf %582, %519 : vector<9x128xf32>
    %584 = vector.broadcast %562 : vector<9x1xf32> to vector<9x128xf32>
    %585 = vector.broadcast %577 : vector<1x128xf32> to vector<9x128xf32>
    %586 = arith.mulf %584, %585 : vector<9x128xf32>
    %587 = arith.addf %583, %586 : vector<9x128xf32>
    %c2_250 = arith.constant 2 : index
    %c7_251 = arith.constant 7 : index
    %c0_252 = arith.constant 0 : index
    %588 = vector.load %arg13[%c2_250, %c7_251, %c0_252] : memref<3x8x128xf32, #tpu.memory_space<vmem>>, vector<1x1x128xf32>
    %589 = vector.shape_cast %588 : vector<1x1x128xf32> to vector<1x128xf32>
    %590 = vector.broadcast %589 : vector<1x128xf32> to vector<9x128xf32>
    %591 = arith.subf %590, %531 : vector<9x128xf32>
    %592 = arith.mulf %591, %591 : vector<9x128xf32>
    %593 = arith.addf %581, %592 : vector<9x128xf32>
    %594 = vector.broadcast %561 : vector<9x1xf32> to vector<9x128xf32>
    %595 = arith.mulf %594, %531 : vector<9x128xf32>
    %596 = vector.broadcast %562 : vector<9x1xf32> to vector<9x128xf32>
    %597 = vector.broadcast %589 : vector<1x128xf32> to vector<9x128xf32>
    %598 = arith.mulf %596, %597 : vector<9x128xf32>
    %599 = arith.addf %595, %598 : vector<9x128xf32>
    %600 = vector.broadcast %560 : vector<9x1xf32> to vector<9x128xf32>
    %601 = arith.mulf %600, %593 : vector<9x128xf32>
    %602 = vector.broadcast %559 : vector<9x1xf32> to vector<9x128xf32>
    %603 = arith.subf %602, %601 : vector<9x128xf32>
    %604 = arith.addf %603, %555 : vector<9x128xf32>
    %cst_253 = arith.constant dense<0xFF800000> : vector<128xf32>
    %605 = vector.multi_reduction <maximumf>, %604, %cst_253 [0] : vector<9x128xf32> to vector<128xf32>
    %606 = vector.shape_cast %605 : vector<128xf32> to vector<1x128xf32>
    %607 = vector.broadcast %606 : vector<1x128xf32> to vector<9x128xf32>
    %608 = arith.subf %604, %607 : vector<9x128xf32>
    %609 = math.exp %608 : vector<9x128xf32>
    %cst_254 = arith.constant dense<0.000000e+00> : vector<128xf32>
    %610 = vector.multi_reduction <add>, %609, %cst_254 [0] : vector<9x128xf32> to vector<128xf32>
    %611 = vector.shape_cast %610 : vector<128xf32> to vector<1x128xf32>
    %612 = math.log %611 : vector<1x128xf32>
    %613 = arith.addf %606, %612 : vector<1x128xf32>
    %cst_255 = arith.constant 0.000000e+00 : f32
    %614 = vector.broadcast %cst_255 : f32 to vector<1x128xf32>
    %615 = arith.subf %614, %613 : vector<1x128xf32>
    %616 = tpu.concatenate %139, %207, %275, %343, %411, %479, %547, %615 in 0 : vector<1x128xf32>, vector<1x128xf32>, vector<1x128xf32>, vector<1x128xf32>, vector<1x128xf32>, vector<1x128xf32>, vector<1x128xf32>, vector<1x128xf32> -> vector<8x128xf32>
    %c0_256 = arith.constant 0 : index
    %c0_257 = arith.constant 0 : index
    %617 = vector.load %arg9[%c0_256, %c0_257] : memref<8x128xf32, #tpu.memory_space<vmem>>, vector<8x128xf32>
    tpu.vector_store %arg9[%c0_256, %c0_257], %616 {strides = array<i32>} : memref<8x128xf32, #tpu.memory_space<vmem>>, vector<8x128xf32>,
    %c0_258 = arith.constant 0 : index
    %c0_259 = arith.constant 0 : index
    %c0_260 = arith.constant 0 : index
    %618 = vector.load %arg11[%c0_258, %c0_259, %c0_260] : memref<3x9x128xf32, #tpu.memory_space<vmem>>, vector<1x9x128xf32>
    %619 = vector.shape_cast %618 : vector<1x9x128xf32> to vector<9x128xf32>
    %620 = vector.shape_cast %575 : vector<9x128xf32> to vector<1x9x128xf32>
    tpu.vector_store %arg11[%c0_258, %c0_259, %c0_260], %620 {strides = array<i32>} : memref<3x9x128xf32, #tpu.memory_space<vmem>>, vector<1x9x128xf32>,
    %c1_261 = arith.constant 1 : index
    %c0_262 = arith.constant 0 : index
    %c0_263 = arith.constant 0 : index
    %621 = vector.load %arg11[%c1_261, %c0_262, %c0_263] : memref<3x9x128xf32, #tpu.memory_space<vmem>>, vector<1x9x128xf32>
    %622 = vector.shape_cast %621 : vector<1x9x128xf32> to vector<9x128xf32>
    %623 = vector.shape_cast %587 : vector<9x128xf32> to vector<1x9x128xf32>
    tpu.vector_store %arg11[%c1_261, %c0_262, %c0_263], %623 {strides = array<i32>} : memref<3x9x128xf32, #tpu.memory_space<vmem>>, vector<1x9x128xf32>,
    %c2_264 = arith.constant 2 : index
    %c0_265 = arith.constant 0 : index
    %c0_266 = arith.constant 0 : index
    %624 = vector.load %arg11[%c2_264, %c0_265, %c0_266] : memref<3x9x128xf32, #tpu.memory_space<vmem>>, vector<1x9x128xf32>
    %625 = vector.shape_cast %624 : vector<1x9x128xf32> to vector<9x128xf32>
    %626 = vector.shape_cast %599 : vector<9x128xf32> to vector<1x9x128xf32>
    tpu.vector_store %arg11[%c2_264, %c0_265, %c0_266], %626 {strides = array<i32>} : memref<3x9x128xf32, #tpu.memory_space<vmem>>, vector<1x9x128xf32>,
    %c0_267 = arith.constant 0 : index
    %c0_268 = arith.constant 0 : index
    %627 = vector.load %arg8[%c0_267, %c0_268] : memref<9x1xf32, #tpu.memory_space<vmem>>, vector<9x1xf32>
    %628 = vector.shape_cast %627 : vector<9x1xf32> to vector<9x1xf32>
    %629 = vector.broadcast %628 : vector<9x1xf32> to vector<9x128xf32>
    %c0_269 = arith.constant 0 : index
    %c0_270 = arith.constant 0 : index
    %c0_271 = arith.constant 0 : index
    %630 = vector.load %arg12[%c0_269, %c0_270, %c0_271] : memref<3x9x128xf32, #tpu.memory_space<vmem>>, vector<1x9x128xf32>
    %631 = vector.shape_cast %630 : vector<1x9x128xf32> to vector<9x128xf32>
    %632 = vector.shape_cast %629 : vector<9x128xf32> to vector<1x9x128xf32>
    tpu.vector_store %arg12[%c0_269, %c0_270, %c0_271], %632 {strides = array<i32>} : memref<3x9x128xf32, #tpu.memory_space<vmem>>, vector<1x9x128xf32>,
    %c1_272 = arith.constant 1 : index
    %c0_273 = arith.constant 0 : index
    %c0_274 = arith.constant 0 : index
    %633 = vector.load %arg12[%c1_272, %c0_273, %c0_274] : memref<3x9x128xf32, #tpu.memory_space<vmem>>, vector<1x9x128xf32>
    %634 = vector.shape_cast %633 : vector<1x9x128xf32> to vector<9x128xf32>
    %635 = vector.shape_cast %629 : vector<9x128xf32> to vector<1x9x128xf32>
    tpu.vector_store %arg12[%c1_272, %c0_273, %c0_274], %635 {strides = array<i32>} : memref<3x9x128xf32, #tpu.memory_space<vmem>>, vector<1x9x128xf32>,
    %c2_275 = arith.constant 2 : index
    %c0_276 = arith.constant 0 : index
    %c0_277 = arith.constant 0 : index
    %636 = vector.load %arg12[%c2_275, %c0_276, %c0_277] : memref<3x9x128xf32, #tpu.memory_space<vmem>>, vector<1x9x128xf32>
    %637 = vector.shape_cast %636 : vector<1x9x128xf32> to vector<9x128xf32>
    %638 = vector.shape_cast %629 : vector<9x128xf32> to vector<1x9x128xf32>
    tpu.vector_store %arg12[%c2_275, %c0_276, %c0_277], %638 {strides = array<i32>} : memref<3x9x128xf32, #tpu.memory_space<vmem>>, vector<1x9x128xf32>,
    return
  }
  func.func @transform_0(%arg0: i32) -> (i32, i32, i32) {
    %c0_i32 = arith.constant 0 : i32
    %c0_i32_0 = arith.constant 0 : i32
    %c0_i32_1 = arith.constant 0 : i32
    return %c0_i32, %c0_i32_0, %arg0 : i32, i32, i32
  }
  func.func @transform_1(%arg0: i32) -> (i32, i32, i32) {
    %c0_i32 = arith.constant 0 : i32
    %c0_i32_0 = arith.constant 0 : i32
    %c0_i32_1 = arith.constant 0 : i32
    return %c0_i32, %c0_i32_0, %arg0 : i32, i32, i32
  }
  func.func @transform_2(%arg0: i32) -> (i32, i32) {
    %c0_i32 = arith.constant 0 : i32
    %c0_i32_0 = arith.constant 0 : i32
    %c0_i32_1 = arith.constant 0 : i32
    return %c0_i32, %c0_i32_0 : i32, i32
  }
  func.func @transform_3(%arg0: i32) -> (i32, i32) {
    %c0_i32 = arith.constant 0 : i32
    %c0_i32_0 = arith.constant 0 : i32
    %c0_i32_1 = arith.constant 0 : i32
    return %c0_i32, %c0_i32_0 : i32, i32
  }
  func.func @transform_4(%arg0: i32) -> (i32, i32) {
    %c0_i32 = arith.constant 0 : i32
    %c0_i32_0 = arith.constant 0 : i32
    %c0_i32_1 = arith.constant 0 : i32
    return %c0_i32, %c0_i32_0 : i32, i32
  }
  func.func @transform_5(%arg0: i32) -> (i32, i32) {
    %c0_i32 = arith.constant 0 : i32
    %c0_i32_0 = arith.constant 0 : i32
    %c0_i32_1 = arith.constant 0 : i32
    return %c0_i32, %c0_i32_0 : i32, i32
  }
  func.func @transform_6(%arg0: i32) -> (i32, i32) {
    %c0_i32 = arith.constant 0 : i32
    %c0_i32_0 = arith.constant 0 : i32
    %c0_i32_1 = arith.constant 0 : i32
    return %c0_i32, %c0_i32_0 : i32, i32
  }
  func.func @transform_7(%arg0: i32) -> (i32, i32) {
    %c0_i32 = arith.constant 0 : i32
    %c0_i32_0 = arith.constant 0 : i32
    %c0_i32_1 = arith.constant 0 : i32
    return %c0_i32, %c0_i32_0 : i32, i32
  }
  func.func @transform_8(%arg0: i32) -> (i32, i32) {
    %c0_i32 = arith.constant 0 : i32
    %c0_i32_0 = arith.constant 0 : i32
    return %c0_i32, %arg0 : i32, i32
  }
  func.func @transform_9(%arg0: i32) -> (i32, i32, i32) {
    %c0_i32 = arith.constant 0 : i32
    %c0_i32_0 = arith.constant 0 : i32
    %c0_i32_1 = arith.constant 0 : i32
    return %c0_i32, %c0_i32_0, %arg0 : i32, i32, i32
  }
  func.func @transform_10(%arg0: i32) -> (i32, i32, i32) {
    %c0_i32 = arith.constant 0 : i32
    %c0_i32_0 = arith.constant 0 : i32
    %c0_i32_1 = arith.constant 0 : i32
    return %c0_i32, %c0_i32_0, %arg0 : i32, i32, i32
  }
  func.func @transform_11(%arg0: i32) -> (i32, i32, i32) {
    %c0_i32 = arith.constant 0 : i32
    %c0_i32_0 = arith.constant 0 : i32
    %c0_i32_1 = arith.constant 0 : i32
    return %c0_i32, %c0_i32_0, %arg0 : i32, i32, i32
  }
}

</mosaic_0001>

<llo_original>
// kernel: tpu_custom_call.1
$region0: #{tpu_custom_call.1}
  #allocation0 [shape = 'u32[]', space=smem, size = 0x4, offset = 0x4, fixed_abs, tag = 'smem constant byte address 0x4 - core index']
  #allocation1 [shape = 'u32[72,128]{1,0:T(1,128)}', space=vmem, size = 0x9000, scoped, tag = 'internal scratch']
  #allocation2 [shape = 'f32[3,8,128]{2,1,0:T(8,128)}', space=vmem, size = 0x3000, scoped, tag = 'scratch operand']
  %s0 = inlined_call_operand.vmem [shape: f32[4,8,128], index: 0, kind: input, shape index: {}]
  %s1 = inlined_call_operand.vmem [shape: f32[3,8,128], index: 1, kind: input, shape index: {}]
  %s2 = inlined_call_operand.vmem [shape: f32[3,4], index: 2, kind: input, shape index: {}]
  %s3 = inlined_call_operand.vmem [shape: f32[9,8], index: 3, kind: input, shape index: {}]
  %s4 = inlined_call_operand.vmem [shape: f32[9,8], index: 4, kind: input, shape index: {}]
  %s5 = inlined_call_operand.vmem [shape: f32[9,8], index: 5, kind: input, shape index: {}]
  %s6 = inlined_call_operand.vmem [shape: f32[9,8], index: 6, kind: input, shape index: {}]
  %s7 = inlined_call_operand.vmem [shape: f32[9,1], index: 7, kind: input, shape index: {}]
  %s8 = inlined_call_operand.hbm [shape: f32[8,128], index: 8, kind: output, shape index: {0}]
  %s9 = inlined_call_operand.vmem [shape: f32[8,9,128], index: 9, kind: output, shape index: {1}]
  %s10 = inlined_call_operand.vmem [shape: f32[3,9,128], index: 10, kind: output, shape index: {2}]
  %s11 = inlined_call_operand.vmem [shape: f32[3,9,128], index: 11, kind: output, shape index: {3}]
  %12 = xla_tuple %s8, %s9, %s10, %s11
  %s13 = sld [smem:[#allocation0]]
  $region70: #{tpu_custom_call.1} parent=0
    _
  %s15 = ssub.s32 1, %s13
  %s16 = scalar_select 0, %s15, %s13
  $region1: #{tpu_custom_call.1} parent=0
    #allocation3 [shape = 'u8[2048]{0}', space=smem, size = 0x800, scoped, tag = 'input window, operand 2, single buffered']
    #allocation4 [shape = 's32[1]{0}', space=sflag, size = 0x4, scoped, tag = 'scoped memory for tpu_custom_call.1']
    #allocation5 [shape = 's32[1]{0}', space=sflag, size = 0x4, scoped, tag = 'scoped memory for tpu_custom_call.1']
    #allocation6 [shape = 'u8[4096]{0}', space=vmem, size = 0x1000, scoped, tag = 'output window, operand 0, single buffered']
    %17 = vsyncpa [#allocation5], 0
    %18 = vsyncpa [#allocation4], 0
    // Predicated region
    $region2: #{tpu_custom_call.1} parent=1 // pred_check
      _
    $region3: #{tpu_custom_call.1} parent=1 // pred_check_branch
      %20 = sbr.rel (0) target = $region5
    $region4: #{tpu_custom_call.1} parent=1 // pred_region
      _
    $region5: #{tpu_custom_call.1} parent=1 // pred_fallthru
      _
    // Predicated region
    $region6: #{tpu_custom_call.1} parent=1 // pred_check
      _
    $region7: #{tpu_custom_call.1} parent=1 // pred_check_branch
      %22 = sbr.rel (0) target = $region9
    $region8: #{tpu_custom_call.1} parent=1 // pred_region
      _
    $region9: #{tpu_custom_call.1} parent=1 // pred_fallthru
      _
    // Predicated region
    $region10: #{tpu_custom_call.1} parent=1 // pred_check
      _
    $region11: #{tpu_custom_call.1} parent=1 // pred_check_branch
      %24 = sbr.rel (0) target = $region13
    $region12: #{tpu_custom_call.1} parent=1 // pred_region
      %26 = vsyncadd [#allocation5], 0
      %s28 = sshll.u32 %s2, 4
      %s29 = int_to_ptr.vmem [resolvable:$true] %s28
      %31 = dma.vmem_to_smem %s29, 64, [#allocation3], [#allocation5]
    $region13: #{tpu_custom_call.1} parent=1 // pred_fallthru
      _
    // Predicated region
    $region14: #{tpu_custom_call.1} parent=1 // pred_check
      _
    $region15: #{tpu_custom_call.1} parent=1 // pred_check_branch
      %33 = sbr.rel (0) target = $region17
    $region16: #{tpu_custom_call.1} parent=1 // pred_region
      _
    $region17: #{tpu_custom_call.1} parent=1 // pred_fallthru
      _
    // Predicated region
    $region18: #{tpu_custom_call.1} parent=1 // pred_check
      _
    $region19: #{tpu_custom_call.1} parent=1 // pred_check_branch
      %35 = sbr.rel (0) target = $region21
    $region20: #{tpu_custom_call.1} parent=1 // pred_region
      _
    $region21: #{tpu_custom_call.1} parent=1 // pred_fallthru
      _
    // Predicated region
    $region22: #{tpu_custom_call.1} parent=1 // pred_check
      _
    $region23: #{tpu_custom_call.1} parent=1 // pred_check_branch
      %37 = sbr.rel (0) target = $region25
    $region24: #{tpu_custom_call.1} parent=1 // pred_region
      _
    $region25: #{tpu_custom_call.1} parent=1 // pred_fallthru
      _
    // Predicated region
    $region26: #{tpu_custom_call.1} parent=1 // pred_check
      _
    $region27: #{tpu_custom_call.1} parent=1 // pred_check_branch
      %39 = sbr.rel (0) target = $region29
    $region28: #{tpu_custom_call.1} parent=1 // pred_region
      _
    $region29: #{tpu_custom_call.1} parent=1 // pred_fallthru
      _
    // Predicated region
    $region30: #{tpu_custom_call.1} parent=1 // pred_check
      _
    $region31: #{tpu_custom_call.1} parent=1 // pred_check_branch
      %41 = sbr.rel (0) target = $region33
    $region32: #{tpu_custom_call.1} parent=1 // pred_region
      _
    $region33: #{tpu_custom_call.1} parent=1 // pred_fallthru
      _
    // Predicated region
    $region34: #{tpu_custom_call.1} parent=1 // pred_check
      _
    $region35: #{tpu_custom_call.1} parent=1 // pred_check_branch
      %43 = sbr.rel (0) target = $region37
    $region36: #{tpu_custom_call.1} parent=1 // pred_region
      %45 = dma.done [#allocation5], 64
    $region37: #{tpu_custom_call.1} parent=1 // pred_fallthru
      _
    %46 = sfence
    %v47 = vld [vmem:[%s0] sm:$0xff]
    %s48 = scalar_lea.vmem %s0, 8
    %v49 = vld [vmem:[%s48] sm:$0xff]
    %s50 = scalar_lea.vmem %s0, 16
    %v51 = vld [vmem:[%s50] sm:$0xff]
    %s52 = scalar_lea.vmem %s0, 24
    %v53 = vld [vmem:[%s52] sm:$0xff]
    %v54 = vld [vmem:[%s1] sm:$0xff]
    %s55 = sld [smem:[#allocation3]]
    %v56 = vstv %s55
    %v57 = vmul.f32 %v56, %v47
    %v58 = vsub.f32 %v54, %v57
    %s59 = sld [smem:[#allocation3 + $0x1]]
    %v60 = vstv %s59
    %v61 = vmul.f32 %v60, %v49
    %v62 = vsub.f32 %v58, %v61
    %s63 = sld [smem:[#allocation3 + $0x2]]
    %v64 = vstv %s63
    %v65 = vmul.f32 %v64, %v51
    %v66 = vsub.f32 %v62, %v65
    %s67 = sld [smem:[#allocation3 + $0x3]]
    %v68 = vstv %s67
    %v69 = vmul.f32 %v68, %v53
    %v70 = vsub.f32 %v66, %v69
    %71 = vst [vmem:[#allocation2] sm:$0xff] %v70
    %s72 = scalar_lea.vmem %s1, 8
    %v73 = vld [vmem:[%s72] sm:$0xff]
    %s74 = sld [smem:[#allocation3 + $0x80]]
    %v75 = vstv %s74
    %v76 = vmul.f32 %v75, %v47
    %v77 = vsub.f32 %v73, %v76
    %s78 = sld [smem:[#allocation3 + $0x81]]
    %v79 = vstv %s78
    %v80 = vmul.f32 %v79, %v49
    %v81 = vsub.f32 %v77, %v80
    %s82 = sld [smem:[#allocation3 + $0x82]]
    %v83 = vstv %s82
    %v84 = vmul.f32 %v83, %v51
    %v85 = vsub.f32 %v81, %v84
    %s86 = sld [smem:[#allocation3 + $0x83]]
    %v87 = vstv %s86
    %v88 = vmul.f32 %v87, %v53
    %v89 = vsub.f32 %v85, %v88
    %s90 = scalar_lea.vmem [#allocation2], 8
    %91 = vst [vmem:[%s90] sm:$0xff] %v89
    %s92 = scalar_lea.vmem %s1, 16
    %v93 = vld [vmem:[%s92] sm:$0xff]
    %s94 = sld [smem:[#allocation3 + $0x100]]
    %v95 = vstv %s94
    %v96 = vmul.f32 %v95, %v47
    %v97 = vsub.f32 %v93, %v96
    %s98 = sld [smem:[#allocation3 + $0x101]]
    %v99 = vstv %s98
    %v100 = vmul.f32 %v99, %v49
    %v101 = vsub.f32 %v97, %v100
    %s102 = sld [smem:[#allocation3 + $0x102]]
    %v103 = vstv %s102
    %v104 = vmul.f32 %v103, %v51
    %v105 = vsub.f32 %v101, %v104
    %s106 = sld [smem:[#allocation3 + $0x103]]
    %v107 = vstv %s106
    %v108 = vmul.f32 %v107, %v53
    %v109 = vsub.f32 %v105, %v108
    %s110 = scalar_lea.vmem [#allocation2], 16
    %111 = vst [vmem:[%s110] sm:$0xff] %v109
    %v112 = vlaneseq
    %v113 = vshrl.u32 %v112, 7
    %v114 = vadd.s32 %v113, 8
    %vm115 = vcmp.eq.s32.totalorder %v113, 0
    %vm116 = vcmp.eq.s32.totalorder %v114, 0
    %v117 = vsel %vm115, 0.0, -1e+30
    %v118 = vsel %vm116, 0.0, -1e+30
    %119 = vst [vmem:[%s9] sm:$0xff] %v117
    %120 = vst [vmem:[%s9 + $0x8] sm:$0x1] %v118
    %v121 = vld [vmem:[%s3] sm:$0xff]
    %v122 = vld [vmem:[%s3 + $0x8] sm:$0x1]
    %v123 = vld [vmem:[%s4] sm:$0xff]
    %v124 = vld [vmem:[%s4 + $0x8] sm:$0x1]
    %v125 = vld [vmem:[%s5] sm:$0xff]
    %v126 = vld [vmem:[%s5 + $0x8] sm:$0x1]
    %v127 = vld [vmem:[%s6] sm:$0xff]
    %v128 = vld [vmem:[%s6 + $0x8] sm:$0x1]
    %v129 = vld [vmem:[#allocation2] sm:$0x1]
    %v130 = vperm.slane %v129, 0
    %v131 = vmul.f32 %v130, %v130
    %v132 = vadd.f32 %v131, 0.0
    %134 = vset.pattern.permute.xlu0 0
    %135 = vperm.xlu0 %134, %v125
    %v136 = vpop.permute.xlu0 %135
    %139 = vset.pattern.permute.xlu0 0
    %140 = vperm.xlu0 %139, %v126
    %v141 = vpop.permute.xlu0 %140
    %v143 = vmul.f32 %v136, 0.0
    %v144 = vmul.f32 %v141, 0.0
    %146 = vset.pattern.permute.xlu0 0
    %147 = vperm.xlu0 %146, %v127
    %v148 = vpop.permute.xlu0 %147
    %151 = vset.pattern.permute.xlu0 0
    %152 = vperm.xlu0 %151, %v128
    %v153 = vpop.permute.xlu0 %152
    %v155 = vmul.f32 %v148, %v130
    %v156 = vmul.f32 %v153, %v130
    %v157 = vadd.f32 %v143, %v155
    %v158 = vadd.f32 %v144, %v156
    %v159 = vld [vmem:[%s90] sm:$0x1]
    %v160 = vperm.slane %v159, 0
    %v161 = vmul.f32 %v160, %v160
    %v162 = vadd.f32 %v132, %v161
    %v163 = vmul.f32 %v148, %v160
    %v164 = vmul.f32 %v153, %v160
    %v165 = vadd.f32 %v143, %v163
    %v166 = vadd.f32 %v144, %v164
    %v167 = vld [vmem:[%s110] sm:$0x1]
    %v168 = vperm.slane %v167, 0
    %v169 = vmul.f32 %v168, %v168
    %v170 = vadd.f32 %v162, %v169
    %v171 = vmul.f32 %v148, %v168
    %v172 = vmul.f32 %v153, %v168
    %v173 = vadd.f32 %v143, %v171
    %v174 = vadd.f32 %v144, %v172
    %176 = vset.pattern.permute.xlu0 0
    %177 = vperm.xlu0 %176, %v123
    %v178 = vpop.permute.xlu0 %177
    %181 = vset.pattern.permute.xlu0 0
    %182 = vperm.xlu0 %181, %v124
    %v183 = vpop.permute.xlu0 %182
    %v185 = vmul.f32 %v178, %v170
    %v186 = vmul.f32 %v183, %v170
    %188 = vset.pattern.permute.xlu0 0
    %189 = vperm.xlu0 %188, %v121
    %v190 = vpop.permute.xlu0 %189
    %193 = vset.pattern.permute.xlu0 0
    %194 = vperm.xlu0 %193, %v122
    %v195 = vpop.permute.xlu0 %194
    %v197 = vsub.f32 %v190, %v185
    %v198 = vsub.f32 %v195, %v186
    %v199 = vadd.f32 %v197, %v117
    %v200 = vadd.f32 %v198, %v118
    %vm201 = vcmask 1040384
    %v202 = vsel %vm201, %v200, -inf
    %v203 = vmax.f32 %v199, %v202
    %v204 = vrot.slane %v203, 4
    %v205 = vmax.f32 %v203, %v204
    %v206 = vrot.slane %v205, 2
    %v207 = vmax.f32 %v205, %v206
    %v208 = vrot.slane %v207, 1
    %v209 = vmax.f32 %v207, %v208
    %v210 = vsub.f32 %v199, %v209
    %v211 = vsub.f32 %v200, %v209
    %v212 = vmul.f32 %v210, 1.442695
    %v213 = vpow.pop %v212
    %v214 = vmul.f32 %v211, 1.442695
    %v215 = vpow.pop %v214
    %v216 = vsel %vm201, %v215, 0.0
    %v217 = vadd.f32 %v213, %v216
    %v218 = vrot.slane %v217, 4
    %v219 = vadd.f32 %v217, %v218
    %v220 = vrot.slane %v219, 2
    %v221 = vadd.f32 %v219, %v220
    %v222 = vrot.slane %v221, 1
    %v223 = vadd.f32 %v221, %v222
    %v224 = vlog2.pop %v223
    %v225 = vmul.f32 %v224, 0.6931472
    %v226 = vadd.f32 %v209, %v225
    %v227 = vsub.f32 0.0, %v226
    %vm228 = vcmp.eq.s32.totalorder %v113, 1
    %vm229 = vcmp.eq.s32.totalorder %v114, 1
    %v230 = vadd.f32 %v199, -0.051293295
    %v231 = vadd.f32 %v200, -0.051293295
    %v232 = vsub.f32 %v230, %v226
    %v233 = vsub.f32 %v231, %v226
    %v234 = vsel %vm228, -2.9957323, %v232
    %v235 = vsel %vm229, -2.9957323, %v233
    %s236 = scalar_lea.vmem %s9, 16
    %237 = vst [vmem:[%s236] sm:$0xff] %v234
    %238 = vst [vmem:[%s236 + $0x8] sm:$0x1] %v235
    %v239 = vld [vmem:[%s3] sm:$0xff]
    %v240 = vld [vmem:[%s3 + $0x8] sm:$0x1]
    %v241 = vld [vmem:[%s4] sm:$0xff]
    %v242 = vld [vmem:[%s4 + $0x8] sm:$0x1]
    %v243 = vld [vmem:[%s5] sm:$0xff]
    %v244 = vld [vmem:[%s5 + $0x8] sm:$0x1]
    %v245 = vld [vmem:[%s6] sm:$0xff]
    %v246 = vld [vmem:[%s6 + $0x8] sm:$0x1]
    %v247 = vld [vmem:[#allocation2 + $0x1] sm:$0x1]
    %v248 = vperm.slane %v247, 0
    %v249 = vsub.f32 %v248, %v157
    %v250 = vsub.f32 %v248, %v158
    %v251 = vmul.f32 %v249, %v249
    %v252 = vmul.f32 %v250, %v250
    %v253 = vadd.f32 %v251, 0.0
    %v254 = vadd.f32 %v252, 0.0
    %256 = vset.pattern.permute.xlu0 1
    %257 = vperm.xlu0 %256, %v243
    %v258 = vpop.permute.xlu0 %257
    %261 = vset.pattern.permute.xlu0 1
    %262 = vperm.xlu0 %261, %v244
    %v263 = vpop.permute.xlu0 %262
    %v265 = vmul.f32 %v258, %v157
    %v266 = vmul.f32 %v263, %v158
    %268 = vset.pattern.permute.xlu0 1
    %269 = vperm.xlu0 %268, %v245
    %v270 = vpop.permute.xlu0 %269
    %273 = vset.pattern.permute.xlu0 1
    %274 = vperm.xlu0 %273, %v246
    %v275 = vpop.permute.xlu0 %274
    %v277 = vmul.f32 %v270, %v248
    %v278 = vmul.f32 %v275, %v248
    %v279 = vadd.f32 %v265, %v277
    %v280 = vadd.f32 %v266, %v278
    %v281 = vld [vmem:[%s90 + $0x1] sm:$0x1]
    %v282 = vperm.slane %v281, 0
    %v283 = vsub.f32 %v282, %v165
    %v284 = vsub.f32 %v282, %v166
    %v285 = vmul.f32 %v283, %v283
    %v286 = vmul.f32 %v284, %v284
    %v287 = vadd.f32 %v253, %v285
    %v288 = vadd.f32 %v254, %v286
    %v289 = vmul.f32 %v258, %v165
    %v290 = vmul.f32 %v263, %v166
    %v291 = vmul.f32 %v270, %v282
    %v292 = vmul.f32 %v275, %v282
    %v293 = vadd.f32 %v289, %v291
    %v294 = vadd.f32 %v290, %v292
    %v295 = vld [vmem:[%s110 + $0x1] sm:$0x1]
    %v296 = vperm.slane %v295, 0
    %v297 = vsub.f32 %v296, %v173
    %v298 = vsub.f32 %v296, %v174
    %v299 = vmul.f32 %v297, %v297
    %v300 = vmul.f32 %v298, %v298
    %v301 = vadd.f32 %v287, %v299
    %v302 = vadd.f32 %v288, %v300
    %v303 = vmul.f32 %v258, %v173
    %v304 = vmul.f32 %v263, %v174
    %v305 = vmul.f32 %v270, %v296
    %v306 = vmul.f32 %v275, %v296
    %v307 = vadd.f32 %v303, %v305
    %v308 = vadd.f32 %v304, %v306
    %310 = vset.pattern.permute.xlu0 1
    %311 = vperm.xlu0 %310, %v241
    %v312 = vpop.permute.xlu0 %311
    %315 = vset.pattern.permute.xlu0 1
    %316 = vperm.xlu0 %315, %v242
    %v317 = vpop.permute.xlu0 %316
    %v319 = vmul.f32 %v312, %v301
    %v320 = vmul.f32 %v317, %v302
    %322 = vset.pattern.permute.xlu0 1
    %323 = vperm.xlu0 %322, %v239
    %v324 = vpop.permute.xlu0 %323
    %327 = vset.pattern.permute.xlu0 1
    %328 = vperm.xlu0 %327, %v240
    %v329 = vpop.permute.xlu0 %328
    %v331 = vsub.f32 %v324, %v319
    %v332 = vsub.f32 %v329, %v320
    %v333 = vadd.f32 %v331, %v234
    %v334 = vadd.f32 %v332, %v235
    %v335 = vsel %vm201, %v334, -inf
    %v336 = vmax.f32 %v333, %v335
    %v337 = vrot.slane %v336, 4
    %v338 = vmax.f32 %v336, %v337
    %v339 = vrot.slane %v338, 2
    %v340 = vmax.f32 %v338, %v339
    %v341 = vrot.slane %v340, 1
    %v342 = vmax.f32 %v340, %v341
    %v343 = vsub.f32 %v333, %v342
    %v344 = vsub.f32 %v334, %v342
    %v345 = vmul.f32 %v343, 1.442695
    %v346 = vpow.pop %v345
    %v347 = vmul.f32 %v344, 1.442695
    %v348 = vpow.pop %v347
    %v349 = vsel %vm201, %v348, 0.0
    %v350 = vadd.f32 %v346, %v349
    %v351 = vrot.slane %v350, 4
    %v352 = vadd.f32 %v350, %v351
    %v353 = vrot.slane %v352, 2
    %v354 = vadd.f32 %v352, %v353
    %v355 = vrot.slane %v354, 1
    %v356 = vadd.f32 %v354, %v355
    %v357 = vlog2.pop %v356
    %v358 = vmul.f32 %v357, 0.6931472
    %v359 = vadd.f32 %v342, %v358
    %v360 = vsub.f32 0.0, %v359
    %vm361 = vcmp.eq.s32.totalorder %v113, 2
    %vm362 = vcmp.eq.s32.totalorder %v114, 2
    %v363 = vadd.f32 %v333, -0.051293295
    %v364 = vadd.f32 %v334, -0.051293295
    %v365 = vsub.f32 %v363, %v359
    %v366 = vsub.f32 %v364, %v359
    %v367 = vsel %vm361, -2.9957323, %v365
    %v368 = vsel %vm362, -2.9957323, %v366
    %s369 = scalar_lea.vmem %s9, 32
    %370 = vst [vmem:[%s369] sm:$0xff] %v367
    %371 = vst [vmem:[%s369 + $0x8] sm:$0x1] %v368
    %v372 = vld [vmem:[%s3] sm:$0xff]
    %v373 = vld [vmem:[%s3 + $0x8] sm:$0x1]
    %v374 = vld [vmem:[%s4] sm:$0xff]
    %v375 = vld [vmem:[%s4 + $0x8] sm:$0x1]
    %v376 = vld [vmem:[%s5] sm:$0xff]
    %v377 = vld [vmem:[%s5 + $0x8] sm:$0x1]
    %v378 = vld [vmem:[%s6] sm:$0xff]
    %v379 = vld [vmem:[%s6 + $0x8] sm:$0x1]
    %v380 = vld [vmem:[#allocation2 + $0x2] sm:$0x1]
    %v381 = vperm.slane %v380, 0
    %v382 = vsub.f32 %v381, %v279
    %v383 = vsub.f32 %v381, %v280
    %v384 = vmul.f32 %v382, %v382
    %v385 = vmul.f32 %v383, %v383
    %v386 = vadd.f32 %v384, 0.0
    %v387 = vadd.f32 %v385, 0.0
    %389 = vset.pattern.permute.xlu0 2
    %390 = vperm.xlu0 %389, %v376
    %v391 = vpop.permute.xlu0 %390
    %394 = vset.pattern.permute.xlu0 2
    %395 = vperm.xlu0 %394, %v377
    %v396 = vpop.permute.xlu0 %395
    %v398 = vmul.f32 %v391, %v279
    %v399 = vmul.f32 %v396, %v280
    %401 = vset.pattern.permute.xlu0 2
    %402 = vperm.xlu0 %401, %v378
    %v403 = vpop.permute.xlu0 %402
    %406 = vset.pattern.permute.xlu0 2
    %407 = vperm.xlu0 %406, %v379
    %v408 = vpop.permute.xlu0 %407
    %v410 = vmul.f32 %v403, %v381
    %v411 = vmul.f32 %v408, %v381
    %v412 = vadd.f32 %v398, %v410
    %v413 = vadd.f32 %v399, %v411
    %v414 = vld [vmem:[%s90 + $0x2] sm:$0x1]
    %v415 = vperm.slane %v414, 0
    %v416 = vsub.f32 %v415, %v293
    %v417 = vsub.f32 %v415, %v294
    %v418 = vmul.f32 %v416, %v416
    %v419 = vmul.f32 %v417, %v417
    %v420 = vadd.f32 %v386, %v418
    %v421 = vadd.f32 %v387, %v419
    %v422 = vmul.f32 %v391, %v293
    %v423 = vmul.f32 %v396, %v294
    %v424 = vmul.f32 %v403, %v415
    %v425 = vmul.f32 %v408, %v415
    %v426 = vadd.f32 %v422, %v424
    %v427 = vadd.f32 %v423, %v425
    %v428 = vld [vmem:[%s110 + $0x2] sm:$0x1]
    %v429 = vperm.slane %v428, 0
    %v430 = vsub.f32 %v429, %v307
    %v431 = vsub.f32 %v429, %v308
    %v432 = vmul.f32 %v430, %v430
    %v433 = vmul.f32 %v431, %v431
    %v434 = vadd.f32 %v420, %v432
    %v435 = vadd.f32 %v421, %v433
    %v436 = vmul.f32 %v391, %v307
    %v437 = vmul.f32 %v396, %v308
    %v438 = vmul.f32 %v403, %v429
    %v439 = vmul.f32 %v408, %v429
    %v440 = vadd.f32 %v436, %v438
    %v441 = vadd.f32 %v437, %v439
    %443 = vset.pattern.permute.xlu0 2
    %444 = vperm.xlu0 %443, %v374
    %v445 = vpop.permute.xlu0 %444
    %448 = vset.pattern.permute.xlu0 2
    %449 = vperm.xlu0 %448, %v375
    %v450 = vpop.permute.xlu0 %449
    %v452 = vmul.f32 %v445, %v434
    %v453 = vmul.f32 %v450, %v435
    %455 = vset.pattern.permute.xlu0 2
    %456 = vperm.xlu0 %455, %v372
    %v457 = vpop.permute.xlu0 %456
    %460 = vset.pattern.permute.xlu0 2
    %461 = vperm.xlu0 %460, %v373
    %v462 = vpop.permute.xlu0 %461
    %v464 = vsub.f32 %v457, %v452
    %v465 = vsub.f32 %v462, %v453
    %v466 = vadd.f32 %v464, %v367
    %v467 = vadd.f32 %v465, %v368
    %v468 = vsel %vm201, %v467, -inf
    %v469 = vmax.f32 %v466, %v468
    %v470 = vrot.slane %v469, 4
    %v471 = vmax.f32 %v469, %v470
    %v472 = vrot.slane %v471, 2
    %v473 = vmax.f32 %v471, %v472
    %v474 = vrot.slane %v473, 1
    %v475 = vmax.f32 %v473, %v474
    %v476 = vsub.f32 %v466, %v475
    %v477 = vsub.f32 %v467, %v475
    %v478 = vmul.f32 %v476, 1.442695
    %v479 = vpow.pop %v478
    %v480 = vmul.f32 %v477, 1.442695
    %v481 = vpow.pop %v480
    %v482 = vsel %vm201, %v481, 0.0
    %v483 = vadd.f32 %v479, %v482
    %v484 = vrot.slane %v483, 4
    %v485 = vadd.f32 %v483, %v484
    %v486 = vrot.slane %v485, 2
    %v487 = vadd.f32 %v485, %v486
    %v488 = vrot.slane %v487, 1
    %v489 = vadd.f32 %v487, %v488
    %v490 = vlog2.pop %v489
    %v491 = vmul.f32 %v490, 0.6931472
    %v492 = vadd.f32 %v475, %v491
    %v493 = vsub.f32 0.0, %v492
    %vm494 = vcmp.eq.s32.totalorder %v113, 3
    %vm495 = vcmp.eq.s32.totalorder %v114, 3
    %v496 = vadd.f32 %v466, -0.051293295
    %v497 = vadd.f32 %v467, -0.051293295
    %v498 = vsub.f32 %v496, %v492
    %v499 = vsub.f32 %v497, %v492
    %v500 = vsel %vm494, -2.9957323, %v498
    %v501 = vsel %vm495, -2.9957323, %v499
    %s502 = scalar_lea.vmem %s9, 48
    %503 = vst [vmem:[%s502] sm:$0xff] %v500
    %504 = vst [vmem:[%s502 + $0x8] sm:$0x1] %v501
    %v505 = vld [vmem:[%s3] sm:$0xff]
    %v506 = vld [vmem:[%s3 + $0x8] sm:$0x1]
    %v507 = vld [vmem:[%s4] sm:$0xff]
    %v508 = vld [vmem:[%s4 + $0x8] sm:$0x1]
    %v509 = vld [vmem:[%s5] sm:$0xff]
    %v510 = vld [vmem:[%s5 + $0x8] sm:$0x1]
    %v511 = vld [vmem:[%s6] sm:$0xff]
    %v512 = vld [vmem:[%s6 + $0x8] sm:$0x1]
    %v513 = vld [vmem:[#allocation2 + $0x3] sm:$0x1]
    %v514 = vperm.slane %v513, 0
    %v515 = vsub.f32 %v514, %v412
    %v516 = vsub.f32 %v514, %v413
    %v517 = vmul.f32 %v515, %v515
    %v518 = vmul.f32 %v516, %v516
    %v519 = vadd.f32 %v517, 0.0
    %v520 = vadd.f32 %v518, 0.0
    %522 = vset.pattern.permute.xlu0 3
    %523 = vperm.xlu0 %522, %v509
    %v524 = vpop.permute.xlu0 %523
    %527 = vset.pattern.permute.xlu0 3
    %528 = vperm.xlu0 %527, %v510
    %v529 = vpop.permute.xlu0 %528
    %v531 = vmul.f32 %v524, %v412
    %v532 = vmul.f32 %v529, %v413
    %534 = vset.pattern.permute.xlu0 3
    %535 = vperm.xlu0 %534, %v511
    %v536 = vpop.permute.xlu0 %535
    %539 = vset.pattern.permute.xlu0 3
    %540 = vperm.xlu0 %539, %v512
    %v541 = vpop.permute.xlu0 %540
    %v543 = vmul.f32 %v536, %v514
    %v544 = vmul.f32 %v541, %v514
    %v545 = vadd.f32 %v531, %v543
    %v546 = vadd.f32 %v532, %v544
    %v547 = vld [vmem:[%s90 + $0x3] sm:$0x1]
    %v548 = vperm.slane %v547, 0
    %v549 = vsub.f32 %v548, %v426
    %v550 = vsub.f32 %v548, %v427
    %v551 = vmul.f32 %v549, %v549
    %v552 = vmul.f32 %v550, %v550
    %v553 = vadd.f32 %v519, %v551
    %v554 = vadd.f32 %v520, %v552
    %v555 = vmul.f32 %v524, %v426
    %v556 = vmul.f32 %v529, %v427
    %v557 = vmul.f32 %v536, %v548
    %v558 = vmul.f32 %v541, %v548
    %v559 = vadd.f32 %v555, %v557
    %v560 = vadd.f32 %v556, %v558
    %v561 = vld [vmem:[%s110 + $0x3] sm:$0x1]
    %v562 = vperm.slane %v561, 0
    %v563 = vsub.f32 %v562, %v440
    %v564 = vsub.f32 %v562, %v441
    %v565 = vmul.f32 %v563, %v563
    %v566 = vmul.f32 %v564, %v564
    %v567 = vadd.f32 %v553, %v565
    %v568 = vadd.f32 %v554, %v566
    %v569 = vmul.f32 %v524, %v440
    %v570 = vmul.f32 %v529, %v441
    %v571 = vmul.f32 %v536, %v562
    %v572 = vmul.f32 %v541, %v562
    %v573 = vadd.f32 %v569, %v571
    %v574 = vadd.f32 %v570, %v572
    %576 = vset.pattern.permute.xlu0 3
    %577 = vperm.xlu0 %576, %v507
    %v578 = vpop.permute.xlu0 %577
    %581 = vset.pattern.permute.xlu0 3
    %582 = vperm.xlu0 %581, %v508
    %v583 = vpop.permute.xlu0 %582
    %v585 = vmul.f32 %v578, %v567
    %v586 = vmul.f32 %v583, %v568
    %588 = vset.pattern.permute.xlu0 3
    %589 = vperm.xlu0 %588, %v505
    %v590 = vpop.permute.xlu0 %589
    %593 = vset.pattern.permute.xlu0 3
    %594 = vperm.xlu0 %593, %v506
    %v595 = vpop.permute.xlu0 %594
    %v597 = vsub.f32 %v590, %v585
    %v598 = vsub.f32 %v595, %v586
    %v599 = vadd.f32 %v597, %v500
    %v600 = vadd.f32 %v598, %v501
    %v601 = vsel %vm201, %v600, -inf
    %v602 = vmax.f32 %v599, %v601
    %v603 = vrot.slane %v602, 4
    %v604 = vmax.f32 %v602, %v603
    %v605 = vrot.slane %v604, 2
    %v606 = vmax.f32 %v604, %v605
    %v607 = vrot.slane %v606, 1
    %v608 = vmax.f32 %v606, %v607
    %v609 = vsub.f32 %v599, %v608
    %v610 = vsub.f32 %v600, %v608
    %v611 = vmul.f32 %v609, 1.442695
    %v612 = vpow.pop %v611
    %v613 = vmul.f32 %v610, 1.442695
    %v614 = vpow.pop %v613
    %v615 = vsel %vm201, %v614, 0.0
    %v616 = vadd.f32 %v612, %v615
    %v617 = vrot.slane %v616, 4
    %v618 = vadd.f32 %v616, %v617
    %v619 = vrot.slane %v618, 2
    %v620 = vadd.f32 %v618, %v619
    %v621 = vrot.slane %v620, 1
    %v622 = vadd.f32 %v620, %v621
    %v623 = vlog2.pop %v622
    %v624 = vmul.f32 %v623, 0.6931472
    %v625 = vadd.f32 %v608, %v624
    %v626 = vsub.f32 0.0, %v625
    %vm627 = vcmp.eq.s32.totalorder %v113, 4
    %vm628 = vcmp.eq.s32.totalorder %v114, 4
    %v629 = vadd.f32 %v599, -0.051293295
    %v630 = vadd.f32 %v600, -0.051293295
    %v631 = vsub.f32 %v629, %v625
    %v632 = vsub.f32 %v630, %v625
    %v633 = vsel %vm627, -2.9957323, %v631
    %v634 = vsel %vm628, -2.9957323, %v632
    %s635 = scalar_lea.vmem %s9, 64
    %636 = vst [vmem:[%s635] sm:$0xff] %v633
    %637 = vst [vmem:[%s635 + $0x8] sm:$0x1] %v634
    %v638 = vld [vmem:[%s3] sm:$0xff]
    %v639 = vld [vmem:[%s3 + $0x8] sm:$0x1]
    %v640 = vld [vmem:[%s4] sm:$0xff]
    %v641 = vld [vmem:[%s4 + $0x8] sm:$0x1]
    %v642 = vld [vmem:[%s5] sm:$0xff]
    %v643 = vld [vmem:[%s5 + $0x8] sm:$0x1]
    %v644 = vld [vmem:[%s6] sm:$0xff]
    %v645 = vld [vmem:[%s6 + $0x8] sm:$0x1]
    %v646 = vld [vmem:[#allocation2 + $0x4] sm:$0x1]
    %v647 = vperm.slane %v646, 0
    %v648 = vsub.f32 %v647, %v545
    %v649 = vsub.f32 %v647, %v546
    %v650 = vmul.f32 %v648, %v648
    %v651 = vmul.f32 %v649, %v649
    %v652 = vadd.f32 %v650, 0.0
    %v653 = vadd.f32 %v651, 0.0
    %655 = vset.pattern.permute.xlu0 4
    %656 = vperm.xlu0 %655, %v642
    %v657 = vpop.permute.xlu0 %656
    %660 = vset.pattern.permute.xlu0 4
    %661 = vperm.xlu0 %660, %v643
    %v662 = vpop.permute.xlu0 %661
    %v664 = vmul.f32 %v657, %v545
    %v665 = vmul.f32 %v662, %v546
    %667 = vset.pattern.permute.xlu0 4
    %668 = vperm.xlu0 %667, %v644
    %v669 = vpop.permute.xlu0 %668
    %672 = vset.pattern.permute.xlu0 4
    %673 = vperm.xlu0 %672, %v645
    %v674 = vpop.permute.xlu0 %673
    %v676 = vmul.f32 %v669, %v647
    %v677 = vmul.f32 %v674, %v647
    %v678 = vadd.f32 %v664, %v676
    %v679 = vadd.f32 %v665, %v677
    %v680 = vld [vmem:[%s90 + $0x4] sm:$0x1]
    %v681 = vperm.slane %v680, 0
    %v682 = vsub.f32 %v681, %v559
    %v683 = vsub.f32 %v681, %v560
    %v684 = vmul.f32 %v682, %v682
    %v685 = vmul.f32 %v683, %v683
    %v686 = vadd.f32 %v652, %v684
    %v687 = vadd.f32 %v653, %v685
    %v688 = vmul.f32 %v657, %v559
    %v689 = vmul.f32 %v662, %v560
    %v690 = vmul.f32 %v669, %v681
    %v691 = vmul.f32 %v674, %v681
    %v692 = vadd.f32 %v688, %v690
    %v693 = vadd.f32 %v689, %v691
    %v694 = vld [vmem:[%s110 + $0x4] sm:$0x1]
    %v695 = vperm.slane %v694, 0
    %v696 = vsub.f32 %v695, %v573
    %v697 = vsub.f32 %v695, %v574
    %v698 = vmul.f32 %v696, %v696
    %v699 = vmul.f32 %v697, %v697
    %v700 = vadd.f32 %v686, %v698
    %v701 = vadd.f32 %v687, %v699
    %v702 = vmul.f32 %v657, %v573
    %v703 = vmul.f32 %v662, %v574
    %v704 = vmul.f32 %v669, %v695
    %v705 = vmul.f32 %v674, %v695
    %v706 = vadd.f32 %v702, %v704
    %v707 = vadd.f32 %v703, %v705
    %709 = vset.pattern.permute.xlu0 4
    %710 = vperm.xlu0 %709, %v640
    %v711 = vpop.permute.xlu0 %710
    %714 = vset.pattern.permute.xlu0 4
    %715 = vperm.xlu0 %714, %v641
    %v716 = vpop.permute.xlu0 %715
    %v718 = vmul.f32 %v711, %v700
    %v719 = vmul.f32 %v716, %v701
    %721 = vset.pattern.permute.xlu0 4
    %722 = vperm.xlu0 %721, %v638
    %v723 = vpop.permute.xlu0 %722
    %726 = vset.pattern.permute.xlu0 4
    %727 = vperm.xlu0 %726, %v639
    %v728 = vpop.permute.xlu0 %727
    %v730 = vsub.f32 %v723, %v718
    %v731 = vsub.f32 %v728, %v719
    %v732 = vadd.f32 %v730, %v633
    %v733 = vadd.f32 %v731, %v634
    %v734 = vsel %vm201, %v733, -inf
    %v735 = vmax.f32 %v732, %v734
    %v736 = vrot.slane %v735, 4
    %v737 = vmax.f32 %v735, %v736
    %v738 = vrot.slane %v737, 2
    %v739 = vmax.f32 %v737, %v738
    %v740 = vrot.slane %v739, 1
    %v741 = vmax.f32 %v739, %v740
    %v742 = vsub.f32 %v732, %v741
    %v743 = vsub.f32 %v733, %v741
    %v744 = vmul.f32 %v742, 1.442695
    %v745 = vpow.pop %v744
    %v746 = vmul.f32 %v743, 1.442695
    %v747 = vpow.pop %v746
    %v748 = vsel %vm201, %v747, 0.0
    %v749 = vadd.f32 %v745, %v748
    %v750 = vrot.slane %v749, 4
    %v751 = vadd.f32 %v749, %v750
    %v752 = vrot.slane %v751, 2
    %v753 = vadd.f32 %v751, %v752
    %v754 = vrot.slane %v753, 1
    %v755 = vadd.f32 %v753, %v754
    %v756 = vlog2.pop %v755
    %v757 = vmul.f32 %v756, 0.6931472
    %v758 = vadd.f32 %v741, %v757
    %v759 = vsub.f32 0.0, %v758
    %vm760 = vcmp.eq.s32.totalorder %v113, 5
    %vm761 = vcmp.eq.s32.totalorder %v114, 5
    %v762 = vadd.f32 %v732, -0.051293295
    %v763 = vadd.f32 %v733, -0.051293295
    %v764 = vsub.f32 %v762, %v758
    %v765 = vsub.f32 %v763, %v758
    %v766 = vsel %vm760, -2.9957323, %v764
    %v767 = vsel %vm761, -2.9957323, %v765
    %s768 = scalar_lea.vmem %s9, 80
    %769 = vst [vmem:[%s768] sm:$0xff] %v766
    %770 = vst [vmem:[%s768 + $0x8] sm:$0x1] %v767
    %v771 = vld [vmem:[%s3] sm:$0xff]
    %v772 = vld [vmem:[%s3 + $0x8] sm:$0x1]
    %v773 = vld [vmem:[%s4] sm:$0xff]
    %v774 = vld [vmem:[%s4 + $0x8] sm:$0x1]
    %v775 = vld [vmem:[%s5] sm:$0xff]
    %v776 = vld [vmem:[%s5 + $0x8] sm:$0x1]
    %v777 = vld [vmem:[%s6] sm:$0xff]
    %v778 = vld [vmem:[%s6 + $0x8] sm:$0x1]
    %v779 = vld [vmem:[#allocation2 + $0x5] sm:$0x1]
    %v780 = vperm.slane %v779, 0
    %v781 = vsub.f32 %v780, %v678
    %v782 = vsub.f32 %v780, %v679
    %v783 = vmul.f32 %v781, %v781
    %v784 = vmul.f32 %v782, %v782
    %v785 = vadd.f32 %v783, 0.0
    %v786 = vadd.f32 %v784, 0.0
    %788 = vset.pattern.permute.xlu0 5
    %789 = vperm.xlu0 %788, %v775
    %v790 = vpop.permute.xlu0 %789
    %793 = vset.pattern.permute.xlu0 5
    %794 = vperm.xlu0 %793, %v776
    %v795 = vpop.permute.xlu0 %794
    %v797 = vmul.f32 %v790, %v678
    %v798 = vmul.f32 %v795, %v679
    %800 = vset.pattern.permute.xlu0 5
    %801 = vperm.xlu0 %800, %v777
    %v802 = vpop.permute.xlu0 %801
    %805 = vset.pattern.permute.xlu0 5
    %806 = vperm.xlu0 %805, %v778
    %v807 = vpop.permute.xlu0 %806
    %v809 = vmul.f32 %v802, %v780
    %v810 = vmul.f32 %v807, %v780
    %v811 = vadd.f32 %v797, %v809
    %v812 = vadd.f32 %v798, %v810
    %v813 = vld [vmem:[%s90 + $0x5] sm:$0x1]
    %v814 = vperm.slane %v813, 0
    %v815 = vsub.f32 %v814, %v692
    %v816 = vsub.f32 %v814, %v693
    %v817 = vmul.f32 %v815, %v815
    %v818 = vmul.f32 %v816, %v816
    %v819 = vadd.f32 %v785, %v817
    %v820 = vadd.f32 %v786, %v818
    %v821 = vmul.f32 %v790, %v692
    %v822 = vmul.f32 %v795, %v693
    %v823 = vmul.f32 %v802, %v814
    %v824 = vmul.f32 %v807, %v814
    %v825 = vadd.f32 %v821, %v823
    %v826 = vadd.f32 %v822, %v824
    %v827 = vld [vmem:[%s110 + $0x5] sm:$0x1]
    %v828 = vperm.slane %v827, 0
    %v829 = vsub.f32 %v828, %v706
    %v830 = vsub.f32 %v828, %v707
    %v831 = vmul.f32 %v829, %v829
    %v832 = vmul.f32 %v830, %v830
    %v833 = vadd.f32 %v819, %v831
    %v834 = vadd.f32 %v820, %v832
    %v835 = vmul.f32 %v790, %v706
    %v836 = vmul.f32 %v795, %v707
    %v837 = vmul.f32 %v802, %v828
    %v838 = vmul.f32 %v807, %v828
    %v839 = vadd.f32 %v835, %v837
    %v840 = vadd.f32 %v836, %v838
    %842 = vset.pattern.permute.xlu0 5
    %843 = vperm.xlu0 %842, %v773
    %v844 = vpop.permute.xlu0 %843
    %847 = vset.pattern.permute.xlu0 5
    %848 = vperm.xlu0 %847, %v774
    %v849 = vpop.permute.xlu0 %848
    %v851 = vmul.f32 %v844, %v833
    %v852 = vmul.f32 %v849, %v834
    %854 = vset.pattern.permute.xlu0 5
    %855 = vperm.xlu0 %854, %v771
    %v856 = vpop.permute.xlu0 %855
    %859 = vset.pattern.permute.xlu0 5
    %860 = vperm.xlu0 %859, %v772
    %v861 = vpop.permute.xlu0 %860
    %v863 = vsub.f32 %v856, %v851
    %v864 = vsub.f32 %v861, %v852
    %v865 = vadd.f32 %v863, %v766
    %v866 = vadd.f32 %v864, %v767
    %v867 = vsel %vm201, %v866, -inf
    %v868 = vmax.f32 %v865, %v867
    %v869 = vrot.slane %v868, 4
    %v870 = vmax.f32 %v868, %v869
    %v871 = vrot.slane %v870, 2
    %v872 = vmax.f32 %v870, %v871
    %v873 = vrot.slane %v872, 1
    %v874 = vmax.f32 %v872, %v873
    %v875 = vsub.f32 %v865, %v874
    %v876 = vsub.f32 %v866, %v874
    %v877 = vmul.f32 %v875, 1.442695
    %v878 = vpow.pop %v877
    %v879 = vmul.f32 %v876, 1.442695
    %v880 = vpow.pop %v879
    %v881 = vsel %vm201, %v880, 0.0
    %v882 = vadd.f32 %v878, %v881
    %v883 = vrot.slane %v882, 4
    %v884 = vadd.f32 %v882, %v883
    %v885 = vrot.slane %v884, 2
    %v886 = vadd.f32 %v884, %v885
    %v887 = vrot.slane %v886, 1
    %v888 = vadd.f32 %v886, %v887
    %v889 = vlog2.pop %v888
    %v890 = vmul.f32 %v889, 0.6931472
    %v891 = vadd.f32 %v874, %v890
    %v892 = vsub.f32 0.0, %v891
    %vm893 = vcmp.eq.s32.totalorder %v113, 6
    %vm894 = vcmp.eq.s32.totalorder %v114, 6
    %v895 = vadd.f32 %v865, -0.051293295
    %v896 = vadd.f32 %v866, -0.051293295
    %v897 = vsub.f32 %v895, %v891
    %v898 = vsub.f32 %v896, %v891
    %v899 = vsel %vm893, -2.9957323, %v897
    %v900 = vsel %vm894, -2.9957323, %v898
    %s901 = scalar_lea.vmem %s9, 96
    %902 = vst [vmem:[%s901] sm:$0xff] %v899
    %903 = vst [vmem:[%s901 + $0x8] sm:$0x1] %v900
    %v904 = vld [vmem:[%s3] sm:$0xff]
    %v905 = vld [vmem:[%s3 + $0x8] sm:$0x1]
    %v906 = vld [vmem:[%s4] sm:$0xff]
    %v907 = vld [vmem:[%s4 + $0x8] sm:$0x1]
    %v908 = vld [vmem:[%s5] sm:$0xff]
    %v909 = vld [vmem:[%s5 + $0x8] sm:$0x1]
    %v910 = vld [vmem:[%s6] sm:$0xff]
    %v911 = vld [vmem:[%s6 + $0x8] sm:$0x1]
    %v912 = vld [vmem:[#allocation2 + $0x6] sm:$0x1]
    %v913 = vperm.slane %v912, 0
    %v914 = vsub.f32 %v913, %v811
    %v915 = vsub.f32 %v913, %v812
    %v916 = vmul.f32 %v914, %v914
    %v917 = vmul.f32 %v915, %v915
    %v918 = vadd.f32 %v916, 0.0
    %v919 = vadd.f32 %v917, 0.0
    %921 = vset.pattern.permute.xlu0 6
    %922 = vperm.xlu0 %921, %v908
    %v923 = vpop.permute.xlu0 %922
    %926 = vset.pattern.permute.xlu0 6
    %927 = vperm.xlu0 %926, %v909
    %v928 = vpop.permute.xlu0 %927
    %v930 = vmul.f32 %v923, %v811
    %v931 = vmul.f32 %v928, %v812
    %933 = vset.pattern.permute.xlu0 6
    %934 = vperm.xlu0 %933, %v910
    %v935 = vpop.permute.xlu0 %934
    %938 = vset.pattern.permute.xlu0 6
    %939 = vperm.xlu0 %938, %v911
    %v940 = vpop.permute.xlu0 %939
    %v942 = vmul.f32 %v935, %v913
    %v943 = vmul.f32 %v940, %v913
    %v944 = vadd.f32 %v930, %v942
    %v945 = vadd.f32 %v931, %v943
    %v946 = vld [vmem:[%s90 + $0x6] sm:$0x1]
    %v947 = vperm.slane %v946, 0
    %v948 = vsub.f32 %v947, %v825
    %v949 = vsub.f32 %v947, %v826
    %v950 = vmul.f32 %v948, %v948
    %v951 = vmul.f32 %v949, %v949
    %v952 = vadd.f32 %v918, %v950
    %v953 = vadd.f32 %v919, %v951
    %v954 = vmul.f32 %v923, %v825
    %v955 = vmul.f32 %v928, %v826
    %v956 = vmul.f32 %v935, %v947
    %v957 = vmul.f32 %v940, %v947
    %v958 = vadd.f32 %v954, %v956
    %v959 = vadd.f32 %v955, %v957
    %v960 = vld [vmem:[%s110 + $0x6] sm:$0x1]
    %v961 = vperm.slane %v960, 0
    %v962 = vsub.f32 %v961, %v839
    %v963 = vsub.f32 %v961, %v840
    %v964 = vmul.f32 %v962, %v962
    %v965 = vmul.f32 %v963, %v963
    %v966 = vadd.f32 %v952, %v964
    %v967 = vadd.f32 %v953, %v965
    %v968 = vmul.f32 %v923, %v839
    %v969 = vmul.f32 %v928, %v840
    %v970 = vmul.f32 %v935, %v961
    %v971 = vmul.f32 %v940, %v961
    %v972 = vadd.f32 %v968, %v970
    %v973 = vadd.f32 %v969, %v971
    %975 = vset.pattern.permute.xlu0 6
    %976 = vperm.xlu0 %975, %v906
    %v977 = vpop.permute.xlu0 %976
    %980 = vset.pattern.permute.xlu0 6
    %981 = vperm.xlu0 %980, %v907
    %v982 = vpop.permute.xlu0 %981
    %v984 = vmul.f32 %v977, %v966
    %v985 = vmul.f32 %v982, %v967
    %987 = vset.pattern.permute.xlu0 6
    %988 = vperm.xlu0 %987, %v904
    %v989 = vpop.permute.xlu0 %988
    %992 = vset.pattern.permute.xlu0 6
    %993 = vperm.xlu0 %992, %v905
    %v994 = vpop.permute.xlu0 %993
    %v996 = vsub.f32 %v989, %v984
    %v997 = vsub.f32 %v994, %v985
    %v998 = vadd.f32 %v996, %v899
    %v999 = vadd.f32 %v997, %v900
    %v1000 = vsel %vm201, %v999, -inf
    %v1001 = vmax.f32 %v998, %v1000
    %v1002 = vrot.slane %v1001, 4
    %v1003 = vmax.f32 %v1001, %v1002
    %v1004 = vrot.slane %v1003, 2
    %v1005 = vmax.f32 %v1003, %v1004
    %v1006 = vrot.slane %v1005, 1
    %v1007 = vmax.f32 %v1005, %v1006
    %v1008 = vsub.f32 %v998, %v1007
    %v1009 = vsub.f32 %v999, %v1007
    %v1010 = vmul.f32 %v1008, 1.442695
    %v1011 = vpow.pop %v1010
    %v1012 = vmul.f32 %v1009, 1.442695
    %v1013 = vpow.pop %v1012
    %v1014 = vsel %vm201, %v1013, 0.0
    %v1015 = vadd.f32 %v1011, %v1014
    %v1016 = vrot.slane %v1015, 4
    %v1017 = vadd.f32 %v1015, %v1016
    %v1018 = vrot.slane %v1017, 2
    %v1019 = vadd.f32 %v1017, %v1018
    %v1020 = vrot.slane %v1019, 1
    %v1021 = vadd.f32 %v1019, %v1020
    %v1022 = vlog2.pop %v1021
    %v1023 = vmul.f32 %v1022, 0.6931472
    %v1024 = vadd.f32 %v1007, %v1023
    %v1025 = vsub.f32 0.0, %v1024
    %vm1026 = vcmp.eq.s32.totalorder %v113, 7
    %vm1027 = vcmp.eq.s32.totalorder %v114, 7
    %v1028 = vadd.f32 %v998, -0.051293295
    %v1029 = vadd.f32 %v999, -0.051293295
    %v1030 = vsub.f32 %v1028, %v1024
    %v1031 = vsub.f32 %v1029, %v1024
    %v1032 = vsel %vm1026, -2.9957323, %v1030
    %v1033 = vsel %vm1027, -2.9957323, %v1031
    %s1034 = scalar_lea.vmem %s9, 112
    %1035 = vst [vmem:[%s1034] sm:$0xff] %v1032
    %1036 = vst [vmem:[%s1034 + $0x8] sm:$0x1] %v1033
    %v1037 = vld [vmem:[%s3] sm:$0xff]
    %v1038 = vld [vmem:[%s3 + $0x8] sm:$0x1]
    %v1039 = vld [vmem:[%s4] sm:$0xff]
    %v1040 = vld [vmem:[%s4 + $0x8] sm:$0x1]
    %v1041 = vld [vmem:[%s5] sm:$0xff]
    %v1042 = vld [vmem:[%s5 + $0x8] sm:$0x1]
    %v1043 = vld [vmem:[%s6] sm:$0xff]
    %v1044 = vld [vmem:[%s6 + $0x8] sm:$0x1]
    %v1045 = vld [vmem:[#allocation2 + $0x7] sm:$0x1]
    %v1046 = vperm.slane %v1045, 0
    %v1047 = vsub.f32 %v1046, %v944
    %v1048 = vsub.f32 %v1046, %v945
    %v1049 = vmul.f32 %v1047, %v1047
    %v1050 = vmul.f32 %v1048, %v1048
    %v1051 = vadd.f32 %v1049, 0.0
    %v1052 = vadd.f32 %v1050, 0.0
    %1054 = vset.pattern.permute.xlu0 7
    %1055 = vperm.xlu0 %1054, %v1041
    %v1056 = vpop.permute.xlu0 %1055
    %1059 = vset.pattern.permute.xlu0 7
    %1060 = vperm.xlu0 %1059, %v1042
    %v1061 = vpop.permute.xlu0 %1060
    %v1063 = vmul.f32 %v1056, %v944
    %v1064 = vmul.f32 %v1061, %v945
    %1066 = vset.pattern.permute.xlu0 7
    %1067 = vperm.xlu0 %1066, %v1043
    %v1068 = vpop.permute.xlu0 %1067
    %1071 = vset.pattern.permute.xlu0 7
    %1072 = vperm.xlu0 %1071, %v1044
    %v1073 = vpop.permute.xlu0 %1072
    %v1075 = vmul.f32 %v1068, %v1046
    %v1076 = vmul.f32 %v1073, %v1046
    %v1077 = vadd.f32 %v1063, %v1075
    %v1078 = vadd.f32 %v1064, %v1076
    %v1079 = vld [vmem:[%s90 + $0x7] sm:$0x1]
    %v1080 = vperm.slane %v1079, 0
    %v1081 = vsub.f32 %v1080, %v958
    %v1082 = vsub.f32 %v1080, %v959
    %v1083 = vmul.f32 %v1081, %v1081
    %v1084 = vmul.f32 %v1082, %v1082
    %v1085 = vadd.f32 %v1051, %v1083
    %v1086 = vadd.f32 %v1052, %v1084
    %v1087 = vmul.f32 %v1056, %v958
    %v1088 = vmul.f32 %v1061, %v959
    %v1089 = vmul.f32 %v1068, %v1080
    %v1090 = vmul.f32 %v1073, %v1080
    %v1091 = vadd.f32 %v1087, %v1089
    %v1092 = vadd.f32 %v1088, %v1090
    %v1093 = vld [vmem:[%s110 + $0x7] sm:$0x1]
    %v1094 = vperm.slane %v1093, 0
    %v1095 = vsub.f32 %v1094, %v972
    %v1096 = vsub.f32 %v1094, %v973
    %v1097 = vmul.f32 %v1095, %v1095
    %v1098 = vmul.f32 %v1096, %v1096
    %v1099 = vadd.f32 %v1085, %v1097
    %v1100 = vadd.f32 %v1086, %v1098
    %v1101 = vmul.f32 %v1056, %v972
    %v1102 = vmul.f32 %v1061, %v973
    %v1103 = vmul.f32 %v1068, %v1094
    %v1104 = vmul.f32 %v1073, %v1094
    %v1105 = vadd.f32 %v1101, %v1103
    %v1106 = vadd.f32 %v1102, %v1104
    %1108 = vset.pattern.permute.xlu0 7
    %1109 = vperm.xlu0 %1108, %v1039
    %v1110 = vpop.permute.xlu0 %1109
    %1113 = vset.pattern.permute.xlu0 7
    %1114 = vperm.xlu0 %1113, %v1040
    %v1115 = vpop.permute.xlu0 %1114
    %v1117 = vmul.f32 %v1110, %v1099
    %v1118 = vmul.f32 %v1115, %v1100
    %1120 = vset.pattern.permute.xlu0 7
    %1121 = vperm.xlu0 %1120, %v1037
    %v1122 = vpop.permute.xlu0 %1121
    %1125 = vset.pattern.permute.xlu0 7
    %1126 = vperm.xlu0 %1125, %v1038
    %v1127 = vpop.permute.xlu0 %1126
    %v1129 = vsub.f32 %v1122, %v1117
    %v1130 = vsub.f32 %v1127, %v1118
    %v1131 = vadd.f32 %v1129, %v1032
    %v1132 = vadd.f32 %v1130, %v1033
    %v1133 = vsel %vm201, %v1132, -inf
    %v1134 = vmax.f32 %v1131, %v1133
    %v1135 = vrot.slane %v1134, 4
    %v1136 = vmax.f32 %v1134, %v1135
    %v1137 = vrot.slane %v1136, 2
    %v1138 = vmax.f32 %v1136, %v1137
    %v1139 = vrot.slane %v1138, 1
    %v1140 = vmax.f32 %v1138, %v1139
    %v1141 = vsub.f32 %v1131, %v1140
    %v1142 = vsub.f32 %v1132, %v1140
    %v1143 = vmul.f32 %v1141, 1.442695
    %v1144 = vpow.pop %v1143
    %v1145 = vmul.f32 %v1142, 1.442695
    %v1146 = vpow.pop %v1145
    %v1147 = vsel %vm201, %v1146, 0.0
    %v1148 = vadd.f32 %v1144, %v1147
    %v1149 = vrot.slane %v1148, 4
    %v1150 = vadd.f32 %v1148, %v1149
    %v1151 = vrot.slane %v1150, 2
    %v1152 = vadd.f32 %v1150, %v1151
    %v1153 = vrot.slane %v1152, 1
    %v1154 = vadd.f32 %v1152, %v1153
    %v1155 = vlog2.pop %v1154
    %v1156 = vmul.f32 %v1155, 0.6931472
    %v1157 = vadd.f32 %v1140, %v1156
    %v1158 = vsub.f32 0.0, %v1157
    %v1159 = vsel %vm201, %v227, %v360
    %vm1160 = vcmask 1041408
    %v1161 = vsel %vm1160, %v1159, %v493
    %vm1162 = vcmask 1042432
    %v1163 = vsel %vm1162, %v1161, %v626
    %vm1164 = vcmask 1043456
    %v1165 = vsel %vm1164, %v1163, %v759
    %vm1166 = vcmask 1044480
    %v1167 = vsel %vm1166, %v1165, %v892
    %vm1168 = vcmask 1045504
    %v1169 = vsel %vm1168, %v1167, %v1025
    %vm1170 = vcmask 1046528
    %v1171 = vsel %vm1170, %v1169, %v1158
    %1172 = vst [vmem:[#allocation6] sm:$0xff] %v1171
    %1173 = vst [vmem:[%s10] sm:$0xff] %v1077
    %1174 = vst [vmem:[%s10 + $0x8] sm:$0x1] %v1078
    %s1175 = scalar_lea.vmem %s10, 16
    %1176 = vst [vmem:[%s1175] sm:$0xff] %v1091
    %1177 = vst [vmem:[%s1175 + $0x8] sm:$0x1] %v1092
    %s1178 = scalar_lea.vmem %s10, 32
    %1179 = vst [vmem:[%s1178] sm:$0xff] %v1105
    %1180 = vst [vmem:[%s1178 + $0x8] sm:$0x1] %v1106
    %v1181 = vld [vmem:[%s7] sm:$0xff]
    %v1182 = vld [vmem:[%s7 + $0x8] sm:$0x1]
    %1184 = vset.pattern.permute.xlu0 0
    %1185 = vperm.xlu0 %1184, %v1181
    %v1186 = vpop.permute.xlu0 %1185
    %1189 = vset.pattern.permute.xlu0 0
    %1190 = vperm.xlu0 %1189, %v1182
    %v1191 = vpop.permute.xlu0 %1190
    %1193 = vst [vmem:[%s11] sm:$0xff] %v1186
    %1194 = vst [vmem:[%s11 + $0x8] sm:$0x1] %v1191
    %s1195 = scalar_lea.vmem %s11, 16
    %1196 = vst [vmem:[%s1195] sm:$0xff] %v1186
    %1197 = vst [vmem:[%s1195 + $0x8] sm:$0x1] %v1191
    %s1198 = scalar_lea.vmem %s11, 32
    %1199 = vst [vmem:[%s1198] sm:$0xff] %v1186
    %1200 = vst [vmem:[%s1198 + $0x8] sm:$0x1] %v1191
    // Predicated region
    $region38: #{tpu_custom_call.1} parent=1 // pred_check
      _
    $region39: #{tpu_custom_call.1} parent=1 // pred_check_branch
      %1202 = sbr.rel (0) target = $region41
    $region40: #{tpu_custom_call.1} parent=1 // pred_region
      %1204 = vsyncadd [#allocation4], 0
      %s1206 = sshll.u32 [#allocation6], 4
      %s1207 = int_to_ptr.vmem [resolvable:$true] %s1206
      %s1208 = sshll.u32 %s8, 4
      %s1209 = int_to_ptr.hbm [resolvable:$true] %s1208
      %1211 = dma.vmem_to_hbm [thread:$0]  %s1207, 128, %s1209, [#allocation4]
    $region41: #{tpu_custom_call.1} parent=1 // pred_fallthru
      _
    // Predicated region
    $region42: #{tpu_custom_call.1} parent=1 // pred_check
      _
    $region43: #{tpu_custom_call.1} parent=1 // pred_check_branch
      %1213 = sbr.rel (0) target = $region45
    $region44: #{tpu_custom_call.1} parent=1 // pred_region
      _
    $region45: #{tpu_custom_call.1} parent=1 // pred_fallthru
      _
    // Predicated region
    $region46: #{tpu_custom_call.1} parent=1 // pred_check
      _
    $region47: #{tpu_custom_call.1} parent=1 // pred_check_branch
      %1215 = sbr.rel (0) target = $region49
    $region48: #{tpu_custom_call.1} parent=1 // pred_region
      _
    $region49: #{tpu_custom_call.1} parent=1 // pred_fallthru
      _
    // Predicated region
    $region50: #{tpu_custom_call.1} parent=1 // pred_check
      _
    $region51: #{tpu_custom_call.1} parent=1 // pred_check_branch
      %1217 = sbr.rel (0) target = $region53
    $region52: #{tpu_custom_call.1} parent=1 // pred_region
      _
    $region53: #{tpu_custom_call.1} parent=1 // pred_fallthru
      _
    // Predicated region
    $region54: #{tpu_custom_call.1} parent=1 // pred_check
      _
    $region55: #{tpu_custom_call.1} parent=1 // pred_check_branch
      %1219 = sbr.rel (0) target = $region57
    $region56: #{tpu_custom_call.1} parent=1 // pred_region
      %1221 = dma.done [#allocation4], 128
    $region57: #{tpu_custom_call.1} parent=1 // pred_fallthru
      _
    // Predicated region
    $region58: #{tpu_custom_call.1} parent=1 // pred_check
      _
    $region59: #{tpu_custom_call.1} parent=1 // pred_check_branch
      %1223 = sbr.rel (0) target = $region61
    $region60: #{tpu_custom_call.1} parent=1 // pred_region
      _
    $region61: #{tpu_custom_call.1} parent=1 // pred_fallthru
      _
    // Predicated region
    $region62: #{tpu_custom_call.1} parent=1 // pred_check
      _
    $region63: #{tpu_custom_call.1} parent=1 // pred_check_branch
      %1225 = sbr.rel (0) target = $region65
    $region64: #{tpu_custom_call.1} parent=1 // pred_region
      _
    $region65: #{tpu_custom_call.1} parent=1 // pred_fallthru
      _
    // Predicated region
    $region66: #{tpu_custom_call.1} parent=1 // pred_check
      _
    $region67: #{tpu_custom_call.1} parent=1 // pred_check_branch
      %1227 = sbr.rel (0) target = $region69
    $region68: #{tpu_custom_call.1} parent=1 // pred_region
      _
    $region69: #{tpu_custom_call.1} parent=1 // pred_fallthru
      _
    %1228 = vsyncpa [#allocation4], 1
    %1229 = vsyncpa [#allocation5], 1

</llo_original>
